<compile_context>
chip_gen: v5e
topology: v5e:2x2
jax: 0.10.0
libtpu: 0.0.40
codegen_flags: <defaults>
</compile_context>

<pallas_src>
import jax
import jax.numpy as jnp
from jax.experimental import pallas as pl
from jax.experimental.pallas import tpu as pltpu

NEG_SLOPE = 0.2


def _elt_dtype():
    """bf16 elementwise chain on v6e/v7x; f32 on v5e and older (no bf16 VPU/EUP)."""
    try:
        kind = jax.devices()[0].device_kind.lower()
    except Exception:
        return jnp.float32
    for old in ("v2", "v3", "v4", "v5"):
        if old in kind:
            return jnp.float32
    return jnp.bfloat16


def _pick_t_dst(n_pad, t_target):
    """Largest 128-multiple dst tile that divides n_pad, <= t_target, and (when
    possible) leaves >= 2 grid steps so both v7x TensorCores get work."""
    t_target = max(int(t_target), 128)
    k = n_pad // 128
    best_m = 1
    for m in range(1, k + 1):
        if k % m == 0 and 128 * m <= t_target and (k // m >= 2 or k == 1):
            best_m = m
    return 128 * best_m


def gat_attn_kernel(adj_ref, xsrc_ref, asrc_ref, adst_ref, m_ref, b_ref, out_ref):
    # adj_ref : [T, N_src]        int8 adj^T tile, self loops folded in
    # xsrc_ref: [N_src, F_out+1]  bf16, last column == 1 (softmax denominator)
    # asrc_ref: [1, N_src]        elt dtype, per-source attention logit
    # adst_ref: [T, 1]            elt dtype, per-destination attention logit
    # m_ref   : [T, 1]            elt dtype, row-wise stabilizer
    #                             = leaky_relu(max(alpha_src) + alpha_dst)
    # b_ref   : [1, F_out]        f32 bias
    # out_ref : [T, F_out]        f32 output tile
    f_out = out_ref.shape[-1]

    # Pairwise logits e[i, j] = alpha_dst[i] + alpha_src[j], leaky-relu(0.2).
    e = adst_ref[...] + asrc_ref[...]                      # [T, N]
    e = jnp.maximum(e, NEG_SLOPE * e)                      # leaky-relu

    # Stable unnormalized softmax weights; e - m <= 0 by construction, so exp<=1
    # even on non-edges, which makes the post-exp mask-multiply safe.
    p = jnp.exp(e - m_ref[...])                            # [T, N]
    p = p * adj_ref[...].astype(p.dtype)                   # mask to edge set

    # Aggregate on the MXU: [T, N] @ [N, F_out+1].  Last column of x_src is
    # ones => last output column is the per-destination softmax denominator.
    agg = jnp.dot(p.astype(xsrc_ref.dtype), xsrc_ref[...],
                  preferred_element_type=jnp.float32)      # [T, F_out+1]

    inv = pl.reciprocal(agg[:, f_out:f_out + 1], approx=True)   # [T, 1]
    out = agg[:, :f_out] * inv + b_ref[...]

    # last=False branch: dropout (identity in eval) then ReLU activation.
    # TODO(synk): training-mode dropout not implemented (reference applies
    #             F.dropout only when training).
    out_ref[...] = jnp.maximum(out, 0.0)


def gat_layer(x, adj, w_src, w_dst, a_src, a_dst, bias, *, t_dst=256):
    n, _ = x.shape
    f_out = w_src.shape[1]
    elt = _elt_dtype()

    # ---- prologue: tiny packed projection, left to XLA ---------------------
    # alpha_dst = x @ (W_dst @ a_dst^T) eliminates the full x_dst projection.
    w_pack = jnp.concatenate(
        [w_src, w_src @ a_src.T, w_dst @ a_dst.T], axis=1)        # [F_in, F_out+2]
    proj = jnp.dot(x, w_pack, preferred_element_type=jnp.float32)  # [N, F_out+2]

    # x_src with a ones column (softmax denominator), stored bf16 for the MXU.
    x_src_aug = jnp.concatenate(
        [proj[:, :f_out], jnp.ones((n, 1), jnp.float32)], axis=1
    ).astype(jnp.bfloat16)                                         # [N, F_out+1]

    alpha_src = proj[:, f_out]                                     # [N]
    alpha_dst = proj[:, f_out + 1]                                 # [N]

    # Row-wise softmax stabilizer (exact): max_j lrelu(a_src[j] + a_dst[i])
    #   = lrelu(max(a_src) + a_dst[i])   since leaky-relu is monotone.
    s = jnp.max(alpha_src)
    m = s + alpha_dst
    m = jnp.maximum(m, NEG_SLOPE * m)                              # [N]

    alpha_src_row = alpha_src.reshape(1, n).astype(elt)
    bias_row = bias.reshape(1, f_out).astype(jnp.float32)

    # int8 adj^T ([dst, src]) with self loops folded via an O(N) diag scatter.
    diag = jnp.arange(n)
    adj_t = (adj != 0).T.astype(jnp.int8)
    adj_t = adj_t.at[diag, diag].set(jnp.int8(1))

    # ---- pad destination axis to a multiple of 128 -------------------------
    n_pad = ((n + 127) // 128) * 128
    pad = n_pad - n
    if pad:
        # Padded dst rows get one fake edge (column 0) so denominators stay > 0
        # (avoids inf/nan in rows that are sliced off anyway).
        pad_blk = jnp.zeros((pad, n), jnp.int8).at[:, 0].set(jnp.int8(1))
        adj_t = jnp.concatenate([adj_t, pad_blk], axis=0)
        zpad = jnp.zeros((pad,), jnp.float32)
        alpha_dst = jnp.concatenate([alpha_dst, zpad], axis=0)
        m = jnp.concatenate([m, zpad], axis=0)
    alpha_dst_col = alpha_dst.reshape(n_pad, 1).astype(elt)
    m_col = m.reshape(n_pad, 1).astype(elt)

    t = _pick_t_dst(n_pad, t_dst)
    grid = (n_pad // t,)

    # ---- tiled attention + aggregation --------------------------------------
    # TODO(synk): for very large N (roughly >32-64K on v7x's 64 MiB VMEM) also
    #             tile the source axis with an accumulating "arbitrary" grid
    #             axis; the row-wise stabilizer makes that a plain accumulation.
    out = pl.pallas_call(
        gat_attn_kernel,
        out_shape=jax.ShapeDtypeStruct((n_pad, f_out), jnp.float32),
        grid_spec=pltpu.PrefetchScalarGridSpec(
            num_scalar_prefetch=0,
            grid=grid,
            in_specs=[
                pl.BlockSpec((t, n), lambda i: (i, 0)),            # adj^T dst tile
                pl.BlockSpec((n, f_out + 1), lambda i: (0, 0)),    # x_src (resident)
                pl.BlockSpec((1, n), lambda i: (0, 0)),            # alpha_src (resident)
                pl.BlockSpec((t, 1), lambda i: (i, 0)),            # alpha_dst tile
                pl.BlockSpec((t, 1), lambda i: (i, 0)),            # stabilizer tile
                pl.BlockSpec((1, f_out), lambda i: (0, 0)),        # bias (resident)
            ],
            out_specs=pl.BlockSpec((t, f_out), lambda i: (i, 0)),
        ),
        compiler_params=pltpu.CompilerParams(
            dimension_semantics=("parallel",),
            vmem_limit_bytes=48 * 1024 * 1024,
        ),
    )(adj_t, x_src_aug, alpha_src_row, alpha_dst_col, m_col, bias_row)
    return out[:n]


def xavier_uniform(key, shape, fan_in, fan_out):
    bound = (6.0 / (fan_in + fan_out)) ** 0.5
    return jax.random.uniform(key, shape, jnp.float32, -bound, bound)


if __name__ == "__main__":
    key = jax.random.PRNGKey(0)
    k_x, k_adj, k_ws, k_wd, k_as, k_ad = jax.random.split(key, 6)

    N, F_IN, F_OUT = 256, 8, 32

    # Inputs.
    x = jax.random.normal(k_x, (N, F_IN), jnp.float32)
    adj = (jax.random.uniform(k_adj, (N, N)) < 0.1).astype(jnp.float32)

    # Parameter shapes follow GATConv with heads=1:
    #   lin_src.weight / lin_dst.weight: [F_OUT, F_IN] -> stored transposed.
    #   att_src / att_dst: [1, 1, F_OUT] -> stored as [1, F_OUT].
    #   bias: [F_OUT] (zeros at init).
    w_src = xavier_uniform(k_ws, (F_IN, F_OUT), F_IN, F_OUT)
    w_dst = xavier_uniform(k_wd, (F_IN, F_OUT), F_IN, F_OUT)
    a_src = xavier_uniform(k_as, (1, F_OUT), F_OUT, 1)
    a_dst = xavier_uniform(k_ad, (1, F_OUT), F_OUT, 1)
    bias = jnp.zeros((F_OUT,), jnp.float32)

    out = jax.jit(gat_layer)(x, adj, w_src, w_dst, a_src, a_dst, bias)
    jax.block_until_ready(out)
    assert out.shape == (N, F_OUT)
    assert bool(jnp.all(jnp.isfinite(out)))
    print("KERNEL_OK")
</pallas_src>

<mosaic_0001>
module attributes {stable_mosaic.version = 11 : i64} {
  func.func @gat_attn_kernel(%arg0: i32, %arg1: memref<128x256xi8, #tpu.memory_space<vmem>>, %arg2: memref<256x33xbf16, #tpu.memory_space<vmem>>, %arg3: memref<1x256xbf16, #tpu.memory_space<vmem>>, %arg4: memref<128x1xbf16, #tpu.memory_space<vmem>>, %arg5: memref<128x1xbf16, #tpu.memory_space<vmem>>, %arg6: memref<1x32xf32, #tpu.memory_space<vmem>>, %arg7: memref<128x32xf32, #tpu.memory_space<vmem>>) attributes {dimension_semantics = [#tpu.dimension_semantics<parallel>], iteration_bounds = array<i64: 2>, scalar_prefetch = 0 : i64, scratch_operands = 0 : i64, tpu.core_type = #tpu.core_type<tc>, window_params = [{transform_indices = @transform_0, window_bounds = array<i64: 128, 256>}, {pipeline_mode = #tpu.pipeline_mode<synchronous>, transform_indices = @transform_1, window_bounds = array<i64: 256, 33>}, {pipeline_mode = #tpu.pipeline_mode<synchronous>, transform_indices = @transform_2, window_bounds = array<i64: 1, 256>}, {transform_indices = @transform_3, window_bounds = array<i64: 128, 1>}, {transform_indices = @transform_4, window_bounds = array<i64: 128, 1>}, {pipeline_mode = #tpu.pipeline_mode<synchronous>, transform_indices = @transform_5, window_bounds = array<i64: 1, 32>}, {transform_indices = @transform_6, window_bounds = array<i64: 128, 32>}]} {
    %c0 = arith.constant 0 : index
    %c0_0 = arith.constant 0 : index
    %0 = vector.load %arg4[%c0, %c0_0] : memref<128x1xbf16, #tpu.memory_space<vmem>>, vector<128x1xbf16>
    %c0_1 = arith.constant 0 : index
    %c0_2 = arith.constant 0 : index
    %1 = vector.load %arg3[%c0_1, %c0_2] : memref<1x256xbf16, #tpu.memory_space<vmem>>, vector<1x256xbf16>
    %2 = vector.broadcast %0 : vector<128x1xbf16> to vector<128x256xbf16>
    %3 = vector.broadcast %1 : vector<1x256xbf16> to vector<128x256xbf16>
    %4 = arith.addf %2, %3 : vector<128x256xbf16>
    %cst = arith.constant 2.001950e-01 : bf16
    %5 = vector.broadcast %cst : bf16 to vector<128x256xbf16>
    %6 = arith.mulf %5, %4 : vector<128x256xbf16>
    %7 = arith.maximumf %4, %6 : vector<128x256xbf16>
    %c0_3 = arith.constant 0 : index
    %c0_4 = arith.constant 0 : index
    %8 = vector.load %arg5[%c0_3, %c0_4] : memref<128x1xbf16, #tpu.memory_space<vmem>>, vector<128x1xbf16>
    %9 = vector.broadcast %8 : vector<128x1xbf16> to vector<128x256xbf16>
    %10 = arith.subf %7, %9 : vector<128x256xbf16>
    %11 = math.exp %10 : vector<128x256xbf16>
    %c0_5 = arith.constant 0 : index
    %c0_6 = arith.constant 0 : index
    %12 = vector.load %arg1[%c0_5, %c0_6] : memref<128x256xi8, #tpu.memory_space<vmem>>, vector<128x256xi8>
    %13 = arith.sitofp %12 : vector<128x256xi8> to vector<128x256xbf16>
    %14 = arith.mulf %11, %13 : vector<128x256xbf16>
    %c0_7 = arith.constant 0 : index
    %c0_8 = arith.constant 0 : index
    %15 = vector.load %arg2[%c0_7, %c0_8] : memref<256x33xbf16, #tpu.memory_space<vmem>>, vector<256x33xbf16>
    %cst_9 = arith.constant dense<0.000000e+00> : vector<128x33xf32>
    %16 = tpu.matmul %14, %15, %cst_9 {dimension_numbers = #tpu.dot_dimension_numbers<[1], [0], [0], [1], [0, 0, 1, 1], [], []>} : vector<128x256xbf16>, vector<256x33xbf16>, vector<128x33xf32> -> vector<128x33xf32>
    %17 = vector.extract_strided_slice %16 {offsets = [0, 32], sizes = [128, 1], strides = [1, 1]} : vector<128x33xf32> to vector<128x1xf32>
    %18 = tpu.reciprocal %17 {approx = true} : vector<128x1xf32> -> vector<128x1xf32>
    %19 = vector.extract_strided_slice %16 {offsets = [0, 0], sizes = [128, 32], strides = [1, 1]} : vector<128x33xf32> to vector<128x32xf32>
    %20 = vector.broadcast %18 : vector<128x1xf32> to vector<128x32xf32>
    %21 = arith.mulf %19, %20 : vector<128x32xf32>
    %c0_10 = arith.constant 0 : index
    %c0_11 = arith.constant 0 : index
    %22 = vector.load %arg6[%c0_10, %c0_11] : memref<1x32xf32, #tpu.memory_space<vmem>>, vector<1x32xf32>
    %23 = vector.broadcast %22 : vector<1x32xf32> to vector<128x32xf32>
    %24 = arith.addf %21, %23 : vector<128x32xf32>
    %cst_12 = arith.constant 0.000000e+00 : f32
    %25 = vector.broadcast %cst_12 : f32 to vector<128x32xf32>
    %26 = arith.maximumf %24, %25 : vector<128x32xf32>
    %c0_13 = arith.constant 0 : index
    %c0_14 = arith.constant 0 : index
    %27 = vector.load %arg7[%c0_13, %c0_14] : memref<128x32xf32, #tpu.memory_space<vmem>>, vector<128x32xf32>
    tpu.vector_store %arg7[%c0_13, %c0_14], %26 {strides = array<i32>} : memref<128x32xf32, #tpu.memory_space<vmem>>, vector<128x32xf32>,
    return
  }
  func.func @transform_0(%arg0: i32) -> (i32, i32) {
    %c0_i32 = arith.constant 0 : i32
    %c0_i32_0 = arith.constant 0 : i32
    return %arg0, %c0_i32 : i32, i32
  }
  func.func @transform_1(%arg0: i32) -> (i32, i32) {
    %c0_i32 = arith.constant 0 : i32
    %c0_i32_0 = arith.constant 0 : i32
    %c0_i32_1 = arith.constant 0 : i32
    return %c0_i32, %c0_i32_0 : i32, i32
  }
  func.func @transform_2(%arg0: i32) -> (i32, i32) {
    %c0_i32 = arith.constant 0 : i32
    %c0_i32_0 = arith.constant 0 : i32
    %c0_i32_1 = arith.constant 0 : i32
    return %c0_i32, %c0_i32_0 : i32, i32
  }
  func.func @transform_3(%arg0: i32) -> (i32, i32) {
    %c0_i32 = arith.constant 0 : i32
    %c0_i32_0 = arith.constant 0 : i32
    return %arg0, %c0_i32 : i32, i32
  }
  func.func @transform_4(%arg0: i32) -> (i32, i32) {
    %c0_i32 = arith.constant 0 : i32
    %c0_i32_0 = arith.constant 0 : i32
    return %arg0, %c0_i32 : i32, i32
  }
  func.func @transform_5(%arg0: i32) -> (i32, i32) {
    %c0_i32 = arith.constant 0 : i32
    %c0_i32_0 = arith.constant 0 : i32
    %c0_i32_1 = arith.constant 0 : i32
    return %c0_i32, %c0_i32_0 : i32, i32
  }
  func.func @transform_6(%arg0: i32) -> (i32, i32) {
    %c0_i32 = arith.constant 0 : i32
    %c0_i32_0 = arith.constant 0 : i32
    return %arg0, %c0_i32 : i32, i32
  }
}

</mosaic_0001>

<llo_original>
// kernel: gat_layer.1
$region0: #{gat_layer.1}
  #allocation0 [shape = 'u32[]', space=smem, size = 0x4, offset = 0x4, fixed_abs, tag = 'smem constant byte address 0x4 - core index']
  #allocation1 [shape = 'u32[72,128]{1,0:T(1,128)}', space=vmem, size = 0x9000, scoped, tag = 'internal scratch']
  %s0 = inlined_call_operand.vmem [shape: s8[256,256], index: 0, kind: input, shape index: {}]
  %s1 = inlined_call_operand.vmem [shape: bf16[256,33], index: 1, kind: input, shape index: {}]
  %s2 = inlined_call_operand.vmem [shape: bf16[1,256], index: 2, kind: input, shape index: {}]
  %s3 = inlined_call_operand.vmem [shape: bf16[256,1], index: 3, kind: input, shape index: {}]
  %s4 = inlined_call_operand.vmem [shape: bf16[256,1], index: 4, kind: input, shape index: {}]
  %s5 = inlined_call_operand.vmem [shape: f32[1,32], index: 5, kind: input, shape index: {}]
  %s6 = inlined_call_operand.vmem [shape: f32[256,32], index: 6, kind: output, shape index: {}]
  %s7 = sld [smem:[#allocation0]]
  $region57: #{gat_layer.1} parent=0
    _
  %s9 = ssub.s32 1, %s7
  %s10 = scalar_select 0, %s9, %s7
  loop: start=0, step=1, limit=4
  $region2: #{gat_layer.1} parent=0 // loop_pre_header
    _
  $region3: #{gat_layer.1} parent=0 // loop_header
    %s12 = sphi 0, %s16
    %p13 = scmp.ge.s32.totalorder %s12, 4
    %s22 = sphi 0, %s24
    %s25 = sphi 0, %s22
    %s26 = sphi 0, %s25
    %s42 = sphi 0, %s26
    %s46 = sphi 0, %s46
    %s48 = sphi 0, %s46
    %s49 = sphi 0, %s48
    %s63 = sphi 0, %s49
    %s67 = sphi 0, %s67
    %s69 = sphi 0, %s67
    %s70 = sphi 0, %s69
    %s84 = sphi 0, %s70
    %s90 = sphi 0, %s92
    %s93 = sphi 0, %s90
    %s94 = sphi 0, %s93
    %s110 = sphi 0, %s94
    %s116 = sphi 0, %s118
    %s119 = sphi 0, %s116
    %s120 = sphi 0, %s119
    %s136 = sphi 0, %s120
    %s140 = sphi 0, %s140
    %s142 = sphi 0, %s140
    %s143 = sphi 0, %s142
    %s157 = sphi 0, %s143
    %s163 = sphi 0, %s165
    %s166 = sphi 0, %s163
    %s167 = sphi 0, %s166
    %s183 = sphi 0, %s167
  $region4: #{gat_layer.1} parent=0 // loop_header_branch
    %15 = sbr.rel (%p13) target = $region8
  $region5: #{gat_layer.1} parent=0 // loop_body
    %s17 = ssub.s32 %s12, 1
    %s18 = ssub.s32 %s12, 2
    %s19 = sadd.s32 %s12, 1
    %s20 = ssub.s32 %s12, %s19
    %p21 = scmp.eq.s32.totalorder %s20, 0
    %s23 = sadd.s32 %s22, 1
    %s24 = scalar_select %p21, %s22, %s23
    %p27 = pneg %p21
    %p28 = scmp.eq.s32.totalorder %s12, 1
    %p29 = por %p27, %p28
    %p30 = scmp.ne.s32.totalorder %s22, %s25
    %p31 = scmp.eq.s32.totalorder %s12, 0
    %p32 = por %p30, %p31
    %p33 = scmp.ne.s32.totalorder %s22, %s25
    %p34 = scmp.eq.s32.totalorder %s17, 1
    %p35 = por %p33, %p34
    %p36 = scmp.ne.s32.totalorder %s25, %s26
    %p37 = scmp.eq.s32.totalorder %s17, 0
    %p38 = por %p36, %p37
    %p39 = scmp.ne.s32.totalorder %s25, %s26
    %p40 = scmp.eq.s32.totalorder %s18, 1
    %p41 = por %p39, %p40
    %p43 = scmp.ne.s32.totalorder %s26, %s42
    %p44 = scmp.eq.s32.totalorder %s18, 0
    %p45 = por %p43, %p44
    %s47 = sadd.s32 %s46, 1
    %p50 = scmp.eq.s32.totalorder %s12, 1
    %p51 = scmp.ne.s32.totalorder %s46, %s48
    %p52 = scmp.eq.s32.totalorder %s12, 0
    %p53 = por %p51, %p52
    %p54 = scmp.ne.s32.totalorder %s46, %s48
    %p55 = scmp.eq.s32.totalorder %s17, 1
    %p56 = por %p54, %p55
    %p57 = scmp.ne.s32.totalorder %s48, %s49
    %p58 = scmp.eq.s32.totalorder %s17, 0
    %p59 = por %p57, %p58
    %p60 = scmp.ne.s32.totalorder %s48, %s49
    %p61 = scmp.eq.s32.totalorder %s18, 1
    %p62 = por %p60, %p61
    %p64 = scmp.ne.s32.totalorder %s49, %s63
    %p65 = scmp.eq.s32.totalorder %s18, 0
    %p66 = por %p64, %p65
    %s68 = sadd.s32 %s67, 1
    %p71 = scmp.eq.s32.totalorder %s12, 1
    %p72 = scmp.ne.s32.totalorder %s67, %s69
    %p73 = scmp.eq.s32.totalorder %s12, 0
    %p74 = por %p72, %p73
    %p75 = scmp.ne.s32.totalorder %s67, %s69
    %p76 = scmp.eq.s32.totalorder %s17, 1
    %p77 = por %p75, %p76
    %p78 = scmp.ne.s32.totalorder %s69, %s70
    %p79 = scmp.eq.s32.totalorder %s17, 0
    %p80 = por %p78, %p79
    %p81 = scmp.ne.s32.totalorder %s69, %s70
    %p82 = scmp.eq.s32.totalorder %s18, 1
    %p83 = por %p81, %p82
    %p85 = scmp.ne.s32.totalorder %s70, %s84
    %p86 = scmp.eq.s32.totalorder %s18, 0
    %p87 = por %p85, %p86
    %s88 = ssub.s32 %s12, %s19
    %p89 = scmp.eq.s32.totalorder %s88, 0
    %s91 = sadd.s32 %s90, 1
    %s92 = scalar_select %p89, %s90, %s91
    %p95 = pneg %p89
    %p96 = scmp.eq.s32.totalorder %s12, 1
    %p97 = por %p95, %p96
    %p98 = scmp.ne.s32.totalorder %s90, %s93
    %p99 = scmp.eq.s32.totalorder %s12, 0
    %p100 = por %p98, %p99
    %p101 = scmp.ne.s32.totalorder %s90, %s93
    %p102 = scmp.eq.s32.totalorder %s17, 1
    %p103 = por %p101, %p102
    %p104 = scmp.ne.s32.totalorder %s93, %s94
    %p105 = scmp.eq.s32.totalorder %s17, 0
    %p106 = por %p104, %p105
    %p107 = scmp.ne.s32.totalorder %s93, %s94
    %p108 = scmp.eq.s32.totalorder %s18, 1
    %p109 = por %p107, %p108
    %p111 = scmp.ne.s32.totalorder %s94, %s110
    %p112 = scmp.eq.s32.totalorder %s18, 0
    %p113 = por %p111, %p112
    %s114 = ssub.s32 %s12, %s19
    %p115 = scmp.eq.s32.totalorder %s114, 0
    %s117 = sadd.s32 %s116, 1
    %s118 = scalar_select %p115, %s116, %s117
    %p121 = pneg %p115
    %p122 = scmp.eq.s32.totalorder %s12, 1
    %p123 = por %p121, %p122
    %p124 = scmp.ne.s32.totalorder %s116, %s119
    %p125 = scmp.eq.s32.totalorder %s12, 0
    %p126 = por %p124, %p125
    %p127 = scmp.ne.s32.totalorder %s116, %s119
    %p128 = scmp.eq.s32.totalorder %s17, 1
    %p129 = por %p127, %p128
    %p130 = scmp.ne.s32.totalorder %s119, %s120
    %p131 = scmp.eq.s32.totalorder %s17, 0
    %p132 = por %p130, %p131
    %p133 = scmp.ne.s32.totalorder %s119, %s120
    %p134 = scmp.eq.s32.totalorder %s18, 1
    %p135 = por %p133, %p134
    %p137 = scmp.ne.s32.totalorder %s120, %s136
    %p138 = scmp.eq.s32.totalorder %s18, 0
    %p139 = por %p137, %p138
    %s141 = sadd.s32 %s140, 1
    %p144 = scmp.eq.s32.totalorder %s12, 1
    %p145 = scmp.ne.s32.totalorder %s140, %s142
    %p146 = scmp.eq.s32.totalorder %s12, 0
    %p147 = por %p145, %p146
    %p148 = scmp.ne.s32.totalorder %s140, %s142
    %p149 = scmp.eq.s32.totalorder %s17, 1
    %p150 = por %p148, %p149
    %p151 = scmp.ne.s32.totalorder %s142, %s143
    %p152 = scmp.eq.s32.totalorder %s17, 0
    %p153 = por %p151, %p152
    %p154 = scmp.ne.s32.totalorder %s142, %s143
    %p155 = scmp.eq.s32.totalorder %s18, 1
    %p156 = por %p154, %p155
    %p158 = scmp.ne.s32.totalorder %s143, %s157
    %p159 = scmp.eq.s32.totalorder %s18, 0
    %p160 = por %p158, %p159
    %s161 = ssub.s32 %s12, %s19
    %p162 = scmp.eq.s32.totalorder %s161, 0
    %s164 = sadd.s32 %s163, 1
    %s165 = scalar_select %p162, %s163, %s164
    %p168 = pneg %p162
    %p169 = scmp.eq.s32.totalorder %s12, 1
    %p170 = por %p168, %p169
    %p171 = scmp.ne.s32.totalorder %s163, %s166
    %p172 = scmp.eq.s32.totalorder %s12, 0
    %p173 = por %p171, %p172
    %p174 = scmp.ne.s32.totalorder %s163, %s166
    %p175 = scmp.eq.s32.totalorder %s17, 1
    %p176 = por %p174, %p175
    %p177 = scmp.ne.s32.totalorder %s166, %s167
    %p178 = scmp.eq.s32.totalorder %s17, 0
    %p179 = por %p177, %p178
    %p180 = scmp.ne.s32.totalorder %s166, %s167
    %p181 = scmp.eq.s32.totalorder %s18, 1
    %p182 = por %p180, %p181
    %p184 = scmp.ne.s32.totalorder %s167, %s183
    %p185 = scmp.eq.s32.totalorder %s18, 0
    %p186 = por %p184, %p185
    %p187 = scmp.le.s32.totalorder 1, %s12
    %p188 = scmp.lt.s32.totalorder %s12, 3
    %p189 = pnand %p187, %p188
    %p190 = pneg %p189
    // Predicated region
    $region9: #{gat_layer.1} parent=5 // pred_check
      _
    $region10: #{gat_layer.1} parent=5 // pred_check_branch
      %192 = sbr.rel (%p189) target = $region12
    $region11: #{gat_layer.1} parent=5 // pred_region
      %s193 = ssub.s32 %s12, 1
      // Predicated region
      $region13: #{gat_layer.1} parent=11 // pred_check
        %p194 = pneg %p59
      $region14: #{gat_layer.1} parent=11 // pred_check_branch
        %196 = sbr.rel (%p194) target = $region16
      $region15: #{gat_layer.1} parent=11 // pred_region
        _
      $region16: #{gat_layer.1} parent=11 // pred_fallthru
        _
      // Predicated region
      $region17: #{gat_layer.1} parent=11 // pred_check
        %p197 = pneg %p80
      $region18: #{gat_layer.1} parent=11 // pred_check_branch
        %199 = sbr.rel (%p197) target = $region20
      $region19: #{gat_layer.1} parent=11 // pred_region
        _
      $region20: #{gat_layer.1} parent=11 // pred_fallthru
        _
      // Predicated region
      $region21: #{gat_layer.1} parent=11 // pred_check
        %p200 = pneg %p153
      $region22: #{gat_layer.1} parent=11 // pred_check_branch
        %202 = sbr.rel (%p200) target = $region24
      $region23: #{gat_layer.1} parent=11 // pred_region
        _
      $region24: #{gat_layer.1} parent=11 // pred_fallthru
        _
    $region12: #{gat_layer.1} parent=5 // pred_fallthru
      _
    %p203 = scmp.lt.s32.totalorder %s12, 2
    // Predicated region
    $region25: #{gat_layer.1} parent=5 // pred_check
      %p204 = pneg %p203
    $region26: #{gat_layer.1} parent=5 // pred_check_branch
      %206 = sbr.rel (%p204) target = $region28
    $region27: #{gat_layer.1} parent=5 // pred_region
      // Predicated region
      $region29: #{gat_layer.1} parent=27 // pred_check
        %p207 = pneg %p32
      $region30: #{gat_layer.1} parent=27 // pred_check_branch
        %209 = sbr.rel (%p207) target = $region32
      $region31: #{gat_layer.1} parent=27 // pred_region
        %s210 = smul.u32 4, %s12
        %p211 = scmp.lt.s32.totalorder %s210, 7
        %s212 = scalar_select %p211, %s210, 7
        %s213 = smul.addr %s212, 2
        %s214 = smul.addr %s213, 8
        %s215 = scalar_lea.vmem %s0, %s214
        %s216 = smul.u32 4, %s12
      $region32: #{gat_layer.1} parent=27 // pred_fallthru
        _
      // Predicated region
      $region33: #{gat_layer.1} parent=27 // pred_check
        %p217 = pneg %p100
      $region34: #{gat_layer.1} parent=27 // pred_check_branch
        %219 = sbr.rel (%p217) target = $region36
      $region35: #{gat_layer.1} parent=27 // pred_region
        %s220 = smul.u32 16, %s12
        %p221 = scmp.lt.s32.totalorder %s220, 31
        %s222 = scalar_select %p221, %s220, 31
        %s223 = smul.addr %s222, 4
        %s224 = scalar_lea.vmem %s3, %s223
        %s225 = smul.u32 16, %s12
      $region36: #{gat_layer.1} parent=27 // pred_fallthru
        _
      // Predicated region
      $region37: #{gat_layer.1} parent=27 // pred_check
        %p226 = pneg %p126
      $region38: #{gat_layer.1} parent=27 // pred_check_branch
        %228 = sbr.rel (%p226) target = $region40
      $region39: #{gat_layer.1} parent=27 // pred_region
        %s229 = smul.u32 16, %s12
        %p230 = scmp.lt.s32.totalorder %s229, 31
        %s231 = scalar_select %p230, %s229, 31
        %s232 = smul.addr %s231, 4
        %s233 = scalar_lea.vmem %s4, %s232
        %s234 = smul.u32 16, %s12
      $region40: #{gat_layer.1} parent=27 // pred_fallthru
        _
    $region28: #{gat_layer.1} parent=5 // pred_fallthru
      _
    %p235 = scmp.le.s32.totalorder 1, %s12
    %p236 = scmp.lt.s32.totalorder %s12, 3
    %p237 = pnand %p235, %p236
    %p238 = pneg %p237
    // Predicated region
    $region41: #{gat_layer.1} parent=5 // pred_check
      _
    $region42: #{gat_layer.1} parent=5 // pred_check_branch
      %240 = sbr.rel (%p237) target = $region44
    $region43: #{gat_layer.1} parent=5 // pred_region
      %s241 = ssub.s32 %s12, 1
      %s242 = smul.u32 4, %s17
      %p243 = scmp.lt.s32.totalorder %s242, 7
      %s244 = scalar_select %p243, %s242, 7
      %s245 = smul.addr %s244, 2
      %s246 = smul.addr %s245, 8
      %s247 = scalar_lea.vmem %s0, %s246
      %p248 = pneg %p38
      %p249 = pneg %p35
      %p250 = pneg %p59
      %p251 = pneg %p56
      %p252 = pneg %p80
      %p253 = pneg %p77
      %s254 = smul.u32 16, %s17
      %p255 = scmp.lt.s32.totalorder %s254, 31
      %s256 = scalar_select %p255, %s254, 31
      %s257 = smul.addr %s256, 4
      %s258 = scalar_lea.vmem %s3, %s257
      %p259 = pneg %p106
      %p260 = pneg %p103
      %s261 = smul.u32 16, %s17
      %p262 = scmp.lt.s32.totalorder %s261, 31
      %s263 = scalar_select %p262, %s261, 31
      %s264 = smul.addr %s263, 4
      %s265 = scalar_lea.vmem %s4, %s264
      %p266 = pneg %p132
      %p267 = pneg %p129
      %p268 = pneg %p153
      %p269 = pneg %p150
      %p270 = pneg %p179
      %p271 = pneg %p176
      %s272 = smul.u32 16, %s17
      %p273 = scmp.lt.s32.totalorder %s272, 31
      %s274 = scalar_select %p273, %s272, 31
      %s275 = smul.addr %s274, 8
      %s276 = scalar_lea.vmem %s6, %s275
      %s277 = smul.u32 4, %s17
      %p278 = scmp.lt.s32.totalorder %s277, 7
      %s279 = scalar_select %p278, %s277, 7
      %s280 = smul.addr %s279, 2
      %s281 = smul.addr %s280, 8
      %s282 = scalar_lea.vmem %s0, %s281
      %s283 = smul.u32 4, %s17
      %s284 = smul.u32 16, %s17
      %p285 = scmp.lt.s32.totalorder %s284, 31
      %s286 = scalar_select %p285, %s284, 31
      %s287 = smul.addr %s286, 4
      %s288 = scalar_lea.vmem %s3, %s287
      %s289 = smul.u32 16, %s17
      %s290 = smul.u32 16, %s17
      %p291 = scmp.lt.s32.totalorder %s290, 31
      %s292 = scalar_select %p291, %s290, 31
      %s293 = smul.addr %s292, 4
      %s294 = scalar_lea.vmem %s4, %s293
      %s295 = smul.u32 16, %s17
      %s296 = smul.u32 16, %s17
      %p297 = scmp.lt.s32.totalorder %s296, 31
      %s298 = scalar_select %p297, %s296, 31
      %s299 = smul.addr %s298, 8
      %s300 = scalar_lea.vmem %s6, %s299
      %s301 = smul.u32 16, %s17
      %v302 = vld [vmem:[%s288] sm:$0xf]
      %v303 = vld [vmem:[%s288 + $0x4] sm:$0xf]
      %v304 = vld [vmem:[%s288 + $0x8] sm:$0xf]
      %v305 = vld [vmem:[%s288 + $0xc] sm:$0xf]
      %v306 = vld [vmem:[%s288 + $0x10] sm:$0xf]
      %v307 = vld [vmem:[%s288 + $0x14] sm:$0xf]
      %v308 = vld [vmem:[%s288 + $0x18] sm:$0xf]
      %v309 = vld [vmem:[%s288 + $0x1c] sm:$0xf]
      %v310 = vld [vmem:[%s288 + $0x20] sm:$0xf]
      %v311 = vld [vmem:[%s288 + $0x24] sm:$0xf]
      %v312 = vld [vmem:[%s288 + $0x28] sm:$0xf]
      %v313 = vld [vmem:[%s288 + $0x2c] sm:$0xf]
      %v314 = vld [vmem:[%s288 + $0x30] sm:$0xf]
      %v315 = vld [vmem:[%s288 + $0x34] sm:$0xf]
      %v316 = vld [vmem:[%s288 + $0x38] sm:$0xf]
      %v317 = vld [vmem:[%s288 + $0x3c] sm:$0xf]
      %v318 = vld [vmem:[%s2] sm:$0x3]
      %320 = vset.pattern.permute.xlu0 0
      %321 = vperm.xlu0 %320, %v302
      %v322 = vpop.permute.xlu0 %321
      %v325 = vunpack.c.l.s4 839922192
      %v326 = vunpack.c.0.s8 %v325
      %v327 = vperm.slane %v322, %v326
      %329 = vset.pattern.permute.xlu0 0
      %330 = vperm.xlu0 %329, %v303
      %v331 = vpop.permute.xlu0 %330
      %v334 = vunpack.c.l.s4 839922192
      %v335 = vunpack.c.0.s8 %v334
      %v336 = vperm.slane %v331, %v335
      %338 = vset.pattern.permute.xlu0 0
      %339 = vperm.xlu0 %338, %v304
      %v340 = vpop.permute.xlu0 %339
      %v343 = vunpack.c.l.s4 839922192
      %v344 = vunpack.c.0.s8 %v343
      %v345 = vperm.slane %v340, %v344
      %347 = vset.pattern.permute.xlu0 0
      %348 = vperm.xlu0 %347, %v305
      %v349 = vpop.permute.xlu0 %348
      %v352 = vunpack.c.l.s4 839922192
      %v353 = vunpack.c.0.s8 %v352
      %v354 = vperm.slane %v349, %v353
      %356 = vset.pattern.permute.xlu0 0
      %357 = vperm.xlu0 %356, %v306
      %v358 = vpop.permute.xlu0 %357
      %v361 = vunpack.c.l.s4 839922192
      %v362 = vunpack.c.0.s8 %v361
      %v363 = vperm.slane %v358, %v362
      %365 = vset.pattern.permute.xlu0 0
      %366 = vperm.xlu0 %365, %v307
      %v367 = vpop.permute.xlu0 %366
      %v370 = vunpack.c.l.s4 839922192
      %v371 = vunpack.c.0.s8 %v370
      %v372 = vperm.slane %v367, %v371
      %374 = vset.pattern.permute.xlu0 0
      %375 = vperm.xlu0 %374, %v308
      %v376 = vpop.permute.xlu0 %375
      %v379 = vunpack.c.l.s4 839922192
      %v380 = vunpack.c.0.s8 %v379
      %v381 = vperm.slane %v376, %v380
      %383 = vset.pattern.permute.xlu0 0
      %384 = vperm.xlu0 %383, %v309
      %v385 = vpop.permute.xlu0 %384
      %v388 = vunpack.c.l.s4 839922192
      %v389 = vunpack.c.0.s8 %v388
      %v390 = vperm.slane %v385, %v389
      %392 = vset.pattern.permute.xlu0 0
      %393 = vperm.xlu0 %392, %v310
      %v394 = vpop.permute.xlu0 %393
      %v397 = vunpack.c.l.s4 839922192
      %v398 = vunpack.c.0.s8 %v397
      %v399 = vperm.slane %v394, %v398
      %401 = vset.pattern.permute.xlu0 0
      %402 = vperm.xlu0 %401, %v311
      %v403 = vpop.permute.xlu0 %402
      %v406 = vunpack.c.l.s4 839922192
      %v407 = vunpack.c.0.s8 %v406
      %v408 = vperm.slane %v403, %v407
      %410 = vset.pattern.permute.xlu0 0
      %411 = vperm.xlu0 %410, %v312
      %v412 = vpop.permute.xlu0 %411
      %v415 = vunpack.c.l.s4 839922192
      %v416 = vunpack.c.0.s8 %v415
      %v417 = vperm.slane %v412, %v416
      %419 = vset.pattern.permute.xlu0 0
      %420 = vperm.xlu0 %419, %v313
      %v421 = vpop.permute.xlu0 %420
      %v424 = vunpack.c.l.s4 839922192
      %v425 = vunpack.c.0.s8 %v424
      %v426 = vperm.slane %v421, %v425
      %428 = vset.pattern.permute.xlu0 0
      %429 = vperm.xlu0 %428, %v314
      %v430 = vpop.permute.xlu0 %429
      %v433 = vunpack.c.l.s4 839922192
      %v434 = vunpack.c.0.s8 %v433
      %v435 = vperm.slane %v430, %v434
      %437 = vset.pattern.permute.xlu0 0
      %438 = vperm.xlu0 %437, %v315
      %v439 = vpop.permute.xlu0 %438
      %v442 = vunpack.c.l.s4 839922192
      %v443 = vunpack.c.0.s8 %v442
      %v444 = vperm.slane %v439, %v443
      %446 = vset.pattern.permute.xlu0 0
      %447 = vperm.xlu0 %446, %v316
      %v448 = vpop.permute.xlu0 %447
      %v451 = vunpack.c.l.s4 839922192
      %v452 = vunpack.c.0.s8 %v451
      %v453 = vperm.slane %v448, %v452
      %455 = vset.pattern.permute.xlu0 0
      %456 = vperm.xlu0 %455, %v317
      %v457 = vpop.permute.xlu0 %456
      %v460 = vunpack.c.l.s4 839922192
      %v461 = vunpack.c.0.s8 %v460
      %v462 = vperm.slane %v457, %v461
      %464 = vst [vmem:[#allocation1] ss:$9 sm:$0xff] %v318
      %v465 = vld [vmem:[#allocation1] sm:$0xff]
      %v466 = vld [vmem:[#allocation1 + $0x9] sm:$0xff]
      %v467 = vpack.i.b16 %v465, %v465
      %v469 = vperm.slane %v467, 0
      %v470 = vpack.i.b16 %v466, %v466
      %v472 = vperm.slane %v470, 0
      %v473 = vunpack.c.l.bf16 %v327
      %v474 = vunpack.c.l.bf16 %v336
      %v475 = vunpack.c.l.bf16 %v345
      %v476 = vunpack.c.l.bf16 %v354
      %v477 = vunpack.c.l.bf16 %v363
      %v478 = vunpack.c.l.bf16 %v372
      %v479 = vunpack.c.l.bf16 %v381
      %v480 = vunpack.c.l.bf16 %v390
      %v481 = vunpack.c.l.bf16 %v399
      %v482 = vunpack.c.l.bf16 %v408
      %v483 = vunpack.c.l.bf16 %v417
      %v484 = vunpack.c.l.bf16 %v426
      %v485 = vunpack.c.l.bf16 %v435
      %v486 = vunpack.c.l.bf16 %v444
      %v487 = vunpack.c.l.bf16 %v453
      %v488 = vunpack.c.l.bf16 %v462
      %v489 = vunpack.c.l.bf16 %v469
      %v490 = vunpack.c.l.bf16 %v472
      %v491 = vadd.f32 %v473, %v489
      %v492 = vadd.f32 %v473, %v490
      %v493 = vadd.f32 %v474, %v489
      %v494 = vadd.f32 %v474, %v490
      %v495 = vadd.f32 %v475, %v489
      %v496 = vadd.f32 %v475, %v490
      %v497 = vadd.f32 %v476, %v489
      %v498 = vadd.f32 %v476, %v490
      %v499 = vadd.f32 %v477, %v489
      %v500 = vadd.f32 %v477, %v490
      %v501 = vadd.f32 %v478, %v489
      %v502 = vadd.f32 %v478, %v490
      %v503 = vadd.f32 %v479, %v489
      %v504 = vadd.f32 %v479, %v490
      %v505 = vadd.f32 %v480, %v489
      %v506 = vadd.f32 %v480, %v490
      %v507 = vadd.f32 %v481, %v489
      %v508 = vadd.f32 %v481, %v490
      %v509 = vadd.f32 %v482, %v489
      %v510 = vadd.f32 %v482, %v490
      %v511 = vadd.f32 %v483, %v489
      %v512 = vadd.f32 %v483, %v490
      %v513 = vadd.f32 %v484, %v489
      %v514 = vadd.f32 %v484, %v490
      %v515 = vadd.f32 %v485, %v489
      %v516 = vadd.f32 %v485, %v490
      %v517 = vadd.f32 %v486, %v489
      %v518 = vadd.f32 %v486, %v490
      %v519 = vadd.f32 %v487, %v489
      %v520 = vadd.f32 %v487, %v490
      %v521 = vadd.f32 %v488, %v489
      %v522 = vadd.f32 %v488, %v490
      %v523 = vpack.c.bf16 %v492, %v491
      %v524 = vpack.c.bf16 %v494, %v493
      %v525 = vpack.c.bf16 %v496, %v495
      %v526 = vpack.c.bf16 %v498, %v497
      %v527 = vpack.c.bf16 %v500, %v499
      %v528 = vpack.c.bf16 %v502, %v501
      %v529 = vpack.c.bf16 %v504, %v503
      %v530 = vpack.c.bf16 %v506, %v505
      %v531 = vpack.c.bf16 %v508, %v507
      %v532 = vpack.c.bf16 %v510, %v509
      %v533 = vpack.c.bf16 %v512, %v511
      %v534 = vpack.c.bf16 %v514, %v513
      %v535 = vpack.c.bf16 %v516, %v515
      %v536 = vpack.c.bf16 %v518, %v517
      %v537 = vpack.c.bf16 %v520, %v519
      %v538 = vpack.c.bf16 %v522, %v521
      %v539 = vunpack.c.l.bf16 %v523
      %v540 = vunpack.c.h.bf16 %v523
      %v541 = vunpack.c.l.bf16 %v524
      %v542 = vunpack.c.h.bf16 %v524
      %v543 = vunpack.c.l.bf16 %v525
      %v544 = vunpack.c.h.bf16 %v525
      %v545 = vunpack.c.l.bf16 %v526
      %v546 = vunpack.c.h.bf16 %v526
      %v547 = vunpack.c.l.bf16 %v527
      %v548 = vunpack.c.h.bf16 %v527
      %v549 = vunpack.c.l.bf16 %v528
      %v550 = vunpack.c.h.bf16 %v528
      %v551 = vunpack.c.l.bf16 %v529
      %v552 = vunpack.c.h.bf16 %v529
      %v553 = vunpack.c.l.bf16 %v530
      %v554 = vunpack.c.h.bf16 %v530
      %v555 = vunpack.c.l.bf16 %v531
      %v556 = vunpack.c.h.bf16 %v531
      %v557 = vunpack.c.l.bf16 %v532
      %v558 = vunpack.c.h.bf16 %v532
      %v559 = vunpack.c.l.bf16 %v533
      %v560 = vunpack.c.h.bf16 %v533
      %v561 = vunpack.c.l.bf16 %v534
      %v562 = vunpack.c.h.bf16 %v534
      %v563 = vunpack.c.l.bf16 %v535
      %v564 = vunpack.c.h.bf16 %v535
      %v565 = vunpack.c.l.bf16 %v536
      %v566 = vunpack.c.h.bf16 %v536
      %v567 = vunpack.c.l.bf16 %v537
      %v568 = vunpack.c.h.bf16 %v537
      %v569 = vunpack.c.l.bf16 %v538
      %v570 = vunpack.c.h.bf16 %v538
      %v571 = vmul.f32 %v539, 0.20019531
      %v572 = vmul.f32 %v540, 0.20019531
      %v573 = vmul.f32 %v541, 0.20019531
      %v574 = vmul.f32 %v542, 0.20019531
      %v575 = vmul.f32 %v543, 0.20019531
      %v576 = vmul.f32 %v544, 0.20019531
      %v577 = vmul.f32 %v545, 0.20019531
      %v578 = vmul.f32 %v546, 0.20019531
      %v579 = vmul.f32 %v547, 0.20019531
      %v580 = vmul.f32 %v548, 0.20019531
      %v581 = vmul.f32 %v549, 0.20019531
      %v582 = vmul.f32 %v550, 0.20019531
      %v583 = vmul.f32 %v551, 0.20019531
      %v584 = vmul.f32 %v552, 0.20019531
      %v585 = vmul.f32 %v553, 0.20019531
      %v586 = vmul.f32 %v554, 0.20019531
      %v587 = vmul.f32 %v555, 0.20019531
      %v588 = vmul.f32 %v556, 0.20019531
      %v589 = vmul.f32 %v557, 0.20019531
      %v590 = vmul.f32 %v558, 0.20019531
      %v591 = vmul.f32 %v559, 0.20019531
      %v592 = vmul.f32 %v560, 0.20019531
      %v593 = vmul.f32 %v561, 0.20019531
      %v594 = vmul.f32 %v562, 0.20019531
      %v595 = vmul.f32 %v563, 0.20019531
      %v596 = vmul.f32 %v564, 0.20019531
      %v597 = vmul.f32 %v565, 0.20019531
      %v598 = vmul.f32 %v566, 0.20019531
      %v599 = vmul.f32 %v567, 0.20019531
      %v600 = vmul.f32 %v568, 0.20019531
      %v601 = vmul.f32 %v569, 0.20019531
      %v602 = vmul.f32 %v570, 0.20019531
      %v603 = vpack.c.bf16 %v572, %v571
      %v604 = vpack.c.bf16 %v574, %v573
      %v605 = vpack.c.bf16 %v576, %v575
      %v606 = vpack.c.bf16 %v578, %v577
      %v607 = vpack.c.bf16 %v580, %v579
      %v608 = vpack.c.bf16 %v582, %v581
      %v609 = vpack.c.bf16 %v584, %v583
      %v610 = vpack.c.bf16 %v586, %v585
      %v611 = vpack.c.bf16 %v588, %v587
      %v612 = vpack.c.bf16 %v590, %v589
      %v613 = vpack.c.bf16 %v592, %v591
      %v614 = vpack.c.bf16 %v594, %v593
      %v615 = vpack.c.bf16 %v596, %v595
      %v616 = vpack.c.bf16 %v598, %v597
      %v617 = vpack.c.bf16 %v600, %v599
      %v618 = vpack.c.bf16 %v602, %v601
      %v619 = vunpack.c.l.bf16 %v603
      %v620 = vunpack.c.h.bf16 %v603
      %v621 = vunpack.c.l.bf16 %v604
      %v622 = vunpack.c.h.bf16 %v604
      %v623 = vunpack.c.l.bf16 %v605
      %v624 = vunpack.c.h.bf16 %v605
      %v625 = vunpack.c.l.bf16 %v606
      %v626 = vunpack.c.h.bf16 %v606
      %v627 = vunpack.c.l.bf16 %v607
      %v628 = vunpack.c.h.bf16 %v607
      %v629 = vunpack.c.l.bf16 %v608
      %v630 = vunpack.c.h.bf16 %v608
      %v631 = vunpack.c.l.bf16 %v609
      %v632 = vunpack.c.h.bf16 %v609
      %v633 = vunpack.c.l.bf16 %v610
      %v634 = vunpack.c.h.bf16 %v610
      %v635 = vunpack.c.l.bf16 %v611
      %v636 = vunpack.c.h.bf16 %v611
      %v637 = vunpack.c.l.bf16 %v612
      %v638 = vunpack.c.h.bf16 %v612
      %v639 = vunpack.c.l.bf16 %v613
      %v640 = vunpack.c.h.bf16 %v613
      %v641 = vunpack.c.l.bf16 %v614
      %v642 = vunpack.c.h.bf16 %v614
      %v643 = vunpack.c.l.bf16 %v615
      %v644 = vunpack.c.h.bf16 %v615
      %v645 = vunpack.c.l.bf16 %v616
      %v646 = vunpack.c.h.bf16 %v616
      %v647 = vunpack.c.l.bf16 %v617
      %v648 = vunpack.c.h.bf16 %v617
      %v649 = vunpack.c.l.bf16 %v618
      %v650 = vunpack.c.h.bf16 %v618
      %v651 = vmax.f32 %v539, %v619
      %v652 = vmax.f32 %v540, %v620
      %v653 = vmax.f32 %v541, %v621
      %v654 = vmax.f32 %v542, %v622
      %v655 = vmax.f32 %v543, %v623
      %v656 = vmax.f32 %v544, %v624
      %v657 = vmax.f32 %v545, %v625
      %v658 = vmax.f32 %v546, %v626
      %v659 = vmax.f32 %v547, %v627
      %v660 = vmax.f32 %v548, %v628
      %v661 = vmax.f32 %v549, %v629
      %v662 = vmax.f32 %v550, %v630
      %v663 = vmax.f32 %v551, %v631
      %v664 = vmax.f32 %v552, %v632
      %v665 = vmax.f32 %v553, %v633
      %v666 = vmax.f32 %v554, %v634
      %v667 = vmax.f32 %v555, %v635
      %v668 = vmax.f32 %v556, %v636
      %v669 = vmax.f32 %v557, %v637
      %v670 = vmax.f32 %v558, %v638
      %v671 = vmax.f32 %v559, %v639
      %v672 = vmax.f32 %v560, %v640
      %v673 = vmax.f32 %v561, %v641
      %v674 = vmax.f32 %v562, %v642
      %v675 = vmax.f32 %v563, %v643
      %v676 = vmax.f32 %v564, %v644
      %v677 = vmax.f32 %v565, %v645
      %v678 = vmax.f32 %v566, %v646
      %v679 = vmax.f32 %v567, %v647
      %v680 = vmax.f32 %v568, %v648
      %v681 = vmax.f32 %v569, %v649
      %v682 = vmax.f32 %v570, %v650
      %v683 = vpack.c.bf16 %v652, %v651
      %v684 = vpack.c.bf16 %v654, %v653
      %v685 = vpack.c.bf16 %v656, %v655
      %v686 = vpack.c.bf16 %v658, %v657
      %v687 = vpack.c.bf16 %v660, %v659
      %v688 = vpack.c.bf16 %v662, %v661
      %v689 = vpack.c.bf16 %v664, %v663
      %v690 = vpack.c.bf16 %v666, %v665
      %v691 = vpack.c.bf16 %v668, %v667
      %v692 = vpack.c.bf16 %v670, %v669
      %v693 = vpack.c.bf16 %v672, %v671
      %v694 = vpack.c.bf16 %v674, %v673
      %v695 = vpack.c.bf16 %v676, %v675
      %v696 = vpack.c.bf16 %v678, %v677
      %v697 = vpack.c.bf16 %v680, %v679
      %v698 = vpack.c.bf16 %v682, %v681
      %v699 = vld [vmem:[%s294] sm:$0xf]
      %v700 = vld [vmem:[%s294 + $0x4] sm:$0xf]
      %v701 = vld [vmem:[%s294 + $0x8] sm:$0xf]
      %v702 = vld [vmem:[%s294 + $0xc] sm:$0xf]
      %v703 = vld [vmem:[%s294 + $0x10] sm:$0xf]
      %v704 = vld [vmem:[%s294 + $0x14] sm:$0xf]
      %v705 = vld [vmem:[%s294 + $0x18] sm:$0xf]
      %v706 = vld [vmem:[%s294 + $0x1c] sm:$0xf]
      %v707 = vld [vmem:[%s294 + $0x20] sm:$0xf]
      %v708 = vld [vmem:[%s294 + $0x24] sm:$0xf]
      %v709 = vld [vmem:[%s294 + $0x28] sm:$0xf]
      %v710 = vld [vmem:[%s294 + $0x2c] sm:$0xf]
      %v711 = vld [vmem:[%s294 + $0x30] sm:$0xf]
      %v712 = vld [vmem:[%s294 + $0x34] sm:$0xf]
      %v713 = vld [vmem:[%s294 + $0x38] sm:$0xf]
      %v714 = vld [vmem:[%s294 + $0x3c] sm:$0xf]
      %716 = vset.pattern.permute.xlu0 0
      %717 = vperm.xlu0 %716, %v699
      %v718 = vpop.permute.xlu0 %717
      %v721 = vunpack.c.l.s4 839922192
      %v722 = vunpack.c.0.s8 %v721
      %v723 = vperm.slane %v718, %v722
      %725 = vset.pattern.permute.xlu0 0
      %726 = vperm.xlu0 %725, %v700
      %v727 = vpop.permute.xlu0 %726
      %v730 = vunpack.c.l.s4 839922192
      %v731 = vunpack.c.0.s8 %v730
      %v732 = vperm.slane %v727, %v731
      %734 = vset.pattern.permute.xlu0 0
      %735 = vperm.xlu0 %734, %v701
      %v736 = vpop.permute.xlu0 %735
      %v739 = vunpack.c.l.s4 839922192
      %v740 = vunpack.c.0.s8 %v739
      %v741 = vperm.slane %v736, %v740
      %743 = vset.pattern.permute.xlu0 0
      %744 = vperm.xlu0 %743, %v702
      %v745 = vpop.permute.xlu0 %744
      %v748 = vunpack.c.l.s4 839922192
      %v749 = vunpack.c.0.s8 %v748
      %v750 = vperm.slane %v745, %v749
      %752 = vset.pattern.permute.xlu0 0
      %753 = vperm.xlu0 %752, %v703
      %v754 = vpop.permute.xlu0 %753
      %v757 = vunpack.c.l.s4 839922192
      %v758 = vunpack.c.0.s8 %v757
      %v759 = vperm.slane %v754, %v758
      %761 = vset.pattern.permute.xlu0 0
      %762 = vperm.xlu0 %761, %v704
      %v763 = vpop.permute.xlu0 %762
      %v766 = vunpack.c.l.s4 839922192
      %v767 = vunpack.c.0.s8 %v766
      %v768 = vperm.slane %v763, %v767
      %770 = vset.pattern.permute.xlu0 0
      %771 = vperm.xlu0 %770, %v705
      %v772 = vpop.permute.xlu0 %771
      %v775 = vunpack.c.l.s4 839922192
      %v776 = vunpack.c.0.s8 %v775
      %v777 = vperm.slane %v772, %v776
      %779 = vset.pattern.permute.xlu0 0
      %780 = vperm.xlu0 %779, %v706
      %v781 = vpop.permute.xlu0 %780
      %v784 = vunpack.c.l.s4 839922192
      %v785 = vunpack.c.0.s8 %v784
      %v786 = vperm.slane %v781, %v785
      %788 = vset.pattern.permute.xlu0 0
      %789 = vperm.xlu0 %788, %v707
      %v790 = vpop.permute.xlu0 %789
      %v793 = vunpack.c.l.s4 839922192
      %v794 = vunpack.c.0.s8 %v793
      %v795 = vperm.slane %v790, %v794
      %797 = vset.pattern.permute.xlu0 0
      %798 = vperm.xlu0 %797, %v708
      %v799 = vpop.permute.xlu0 %798
      %v802 = vunpack.c.l.s4 839922192
      %v803 = vunpack.c.0.s8 %v802
      %v804 = vperm.slane %v799, %v803
      %806 = vset.pattern.permute.xlu0 0
      %807 = vperm.xlu0 %806, %v709
      %v808 = vpop.permute.xlu0 %807
      %v811 = vunpack.c.l.s4 839922192
      %v812 = vunpack.c.0.s8 %v811
      %v813 = vperm.slane %v808, %v812
      %815 = vset.pattern.permute.xlu0 0
      %816 = vperm.xlu0 %815, %v710
      %v817 = vpop.permute.xlu0 %816
      %v820 = vunpack.c.l.s4 839922192
      %v821 = vunpack.c.0.s8 %v820
      %v822 = vperm.slane %v817, %v821
      %824 = vset.pattern.permute.xlu0 0
      %825 = vperm.xlu0 %824, %v711
      %v826 = vpop.permute.xlu0 %825
      %v829 = vunpack.c.l.s4 839922192
      %v830 = vunpack.c.0.s8 %v829
      %v831 = vperm.slane %v826, %v830
      %833 = vset.pattern.permute.xlu0 0
      %834 = vperm.xlu0 %833, %v712
      %v835 = vpop.permute.xlu0 %834
      %v838 = vunpack.c.l.s4 839922192
      %v839 = vunpack.c.0.s8 %v838
      %v840 = vperm.slane %v835, %v839
      %842 = vset.pattern.permute.xlu0 0
      %843 = vperm.xlu0 %842, %v713
      %v844 = vpop.permute.xlu0 %843
      %v847 = vunpack.c.l.s4 839922192
      %v848 = vunpack.c.0.s8 %v847
      %v849 = vperm.slane %v844, %v848
      %851 = vset.pattern.permute.xlu0 0
      %852 = vperm.xlu0 %851, %v714
      %v853 = vpop.permute.xlu0 %852
      %v856 = vunpack.c.l.s4 839922192
      %v857 = vunpack.c.0.s8 %v856
      %v858 = vperm.slane %v853, %v857
      %v859 = vunpack.c.l.bf16 %v683
      %v860 = vunpack.c.h.bf16 %v683
      %v861 = vunpack.c.l.bf16 %v684
      %v862 = vunpack.c.h.bf16 %v684
      %v863 = vunpack.c.l.bf16 %v685
      %v864 = vunpack.c.h.bf16 %v685
      %v865 = vunpack.c.l.bf16 %v686
      %v866 = vunpack.c.h.bf16 %v686
      %v867 = vunpack.c.l.bf16 %v687
      %v868 = vunpack.c.h.bf16 %v687
      %v869 = vunpack.c.l.bf16 %v688
      %v870 = vunpack.c.h.bf16 %v688
      %v871 = vunpack.c.l.bf16 %v689
      %v872 = vunpack.c.h.bf16 %v689
      %v873 = vunpack.c.l.bf16 %v690
      %v874 = vunpack.c.h.bf16 %v690
      %v875 = vunpack.c.l.bf16 %v691
      %v876 = vunpack.c.h.bf16 %v691
      %v877 = vunpack.c.l.bf16 %v692
      %v878 = vunpack.c.h.bf16 %v692
      %v879 = vunpack.c.l.bf16 %v693
      %v880 = vunpack.c.h.bf16 %v693
      %v881 = vunpack.c.l.bf16 %v694
      %v882 = vunpack.c.h.bf16 %v694
      %v883 = vunpack.c.l.bf16 %v695
      %v884 = vunpack.c.h.bf16 %v695
      %v885 = vunpack.c.l.bf16 %v696
      %v886 = vunpack.c.h.bf16 %v696
      %v887 = vunpack.c.l.bf16 %v697
      %v888 = vunpack.c.h.bf16 %v697
      %v889 = vunpack.c.l.bf16 %v698
      %v890 = vunpack.c.h.bf16 %v698
      %v891 = vunpack.c.l.bf16 %v723
      %v892 = vunpack.c.l.bf16 %v732
      %v893 = vunpack.c.l.bf16 %v741
      %v894 = vunpack.c.l.bf16 %v750
      %v895 = vunpack.c.l.bf16 %v759
      %v896 = vunpack.c.l.bf16 %v768
      %v897 = vunpack.c.l.bf16 %v777
      %v898 = vunpack.c.l.bf16 %v786
      %v899 = vunpack.c.l.bf16 %v795
      %v900 = vunpack.c.l.bf16 %v804
      %v901 = vunpack.c.l.bf16 %v813
      %v902 = vunpack.c.l.bf16 %v822
      %v903 = vunpack.c.l.bf16 %v831
      %v904 = vunpack.c.l.bf16 %v840
      %v905 = vunpack.c.l.bf16 %v849
      %v906 = vunpack.c.l.bf16 %v858
      %v907 = vsub.f32 %v859, %v891
      %v908 = vsub.f32 %v860, %v891
      %v909 = vsub.f32 %v861, %v892
      %v910 = vsub.f32 %v862, %v892
      %v911 = vsub.f32 %v863, %v893
      %v912 = vsub.f32 %v864, %v893
      %v913 = vsub.f32 %v865, %v894
      %v914 = vsub.f32 %v866, %v894
      %v915 = vsub.f32 %v867, %v895
      %v916 = vsub.f32 %v868, %v895
      %v917 = vsub.f32 %v869, %v896
      %v918 = vsub.f32 %v870, %v896
      %v919 = vsub.f32 %v871, %v897
      %v920 = vsub.f32 %v872, %v897
      %v921 = vsub.f32 %v873, %v898
      %v922 = vsub.f32 %v874, %v898
      %v923 = vsub.f32 %v875, %v899
      %v924 = vsub.f32 %v876, %v899
      %v925 = vsub.f32 %v877, %v900
      %v926 = vsub.f32 %v878, %v900
      %v927 = vsub.f32 %v879, %v901
      %v928 = vsub.f32 %v880, %v901
      %v929 = vsub.f32 %v881, %v902
      %v930 = vsub.f32 %v882, %v902
      %v931 = vsub.f32 %v883, %v903
      %v932 = vsub.f32 %v884, %v903
      %v933 = vsub.f32 %v885, %v904
      %v934 = vsub.f32 %v886, %v904
      %v935 = vsub.f32 %v887, %v905
      %v936 = vsub.f32 %v888, %v905
      %v937 = vsub.f32 %v889, %v906
      %v938 = vsub.f32 %v890, %v906
      %v939 = vpack.c.bf16 %v908, %v907
      %v940 = vpack.c.bf16 %v910, %v909
      %v941 = vpack.c.bf16 %v912, %v911
      %v942 = vpack.c.bf16 %v914, %v913
      %v943 = vpack.c.bf16 %v916, %v915
      %v944 = vpack.c.bf16 %v918, %v917
      %v945 = vpack.c.bf16 %v920, %v919
      %v946 = vpack.c.bf16 %v922, %v921
      %v947 = vpack.c.bf16 %v924, %v923
      %v948 = vpack.c.bf16 %v926, %v925
      %v949 = vpack.c.bf16 %v928, %v927
      %v950 = vpack.c.bf16 %v930, %v929
      %v951 = vpack.c.bf16 %v932, %v931
      %v952 = vpack.c.bf16 %v934, %v933
      %v953 = vpack.c.bf16 %v936, %v935
      %v954 = vpack.c.bf16 %v938, %v937
      %v955 = vunpack.c.l.bf16 %v939
      %v956 = vunpack.c.h.bf16 %v939
      %v957 = vunpack.c.l.bf16 %v940
      %v958 = vunpack.c.h.bf16 %v940
      %v959 = vunpack.c.l.bf16 %v941
      %v960 = vunpack.c.h.bf16 %v941
      %v961 = vunpack.c.l.bf16 %v942
      %v962 = vunpack.c.h.bf16 %v942
      %v963 = vunpack.c.l.bf16 %v943
      %v964 = vunpack.c.h.bf16 %v943
      %v965 = vunpack.c.l.bf16 %v944
      %v966 = vunpack.c.h.bf16 %v944
      %v967 = vunpack.c.l.bf16 %v945
      %v968 = vunpack.c.h.bf16 %v945
      %v969 = vunpack.c.l.bf16 %v946
      %v970 = vunpack.c.h.bf16 %v946
      %v971 = vunpack.c.l.bf16 %v947
      %v972 = vunpack.c.h.bf16 %v947
      %v973 = vunpack.c.l.bf16 %v948
      %v974 = vunpack.c.h.bf16 %v948
      %v975 = vunpack.c.l.bf16 %v949
      %v976 = vunpack.c.h.bf16 %v949
      %v977 = vunpack.c.l.bf16 %v950
      %v978 = vunpack.c.h.bf16 %v950
      %v979 = vunpack.c.l.bf16 %v951
      %v980 = vunpack.c.h.bf16 %v951
      %v981 = vunpack.c.l.bf16 %v952
      %v982 = vunpack.c.h.bf16 %v952
      %v983 = vunpack.c.l.bf16 %v953
      %v984 = vunpack.c.h.bf16 %v953
      %v985 = vunpack.c.l.bf16 %v954
      %v986 = vunpack.c.h.bf16 %v954
      %v987 = vmul.f32 %v955, 1.442695
      %v988 = vpow.pop %v987
      %v989 = vmul.f32 %v956, 1.442695
      %v990 = vpow.pop %v989
      %v991 = vmul.f32 %v957, 1.442695
      %v992 = vpow.pop %v991
      %v993 = vmul.f32 %v958, 1.442695
      %v994 = vpow.pop %v993
      %v995 = vmul.f32 %v959, 1.442695
      %v996 = vpow.pop %v995
      %v997 = vmul.f32 %v960, 1.442695
      %v998 = vpow.pop %v997
      %v999 = vmul.f32 %v961, 1.442695
      %v1000 = vpow.pop %v999
      %v1001 = vmul.f32 %v962, 1.442695
      %v1002 = vpow.pop %v1001
      %v1003 = vmul.f32 %v963, 1.442695
      %v1004 = vpow.pop %v1003
      %v1005 = vmul.f32 %v964, 1.442695
      %v1006 = vpow.pop %v1005
      %v1007 = vmul.f32 %v965, 1.442695
      %v1008 = vpow.pop %v1007
      %v1009 = vmul.f32 %v966, 1.442695
      %v1010 = vpow.pop %v1009
      %v1011 = vmul.f32 %v967, 1.442695
      %v1012 = vpow.pop %v1011
      %v1013 = vmul.f32 %v968, 1.442695
      %v1014 = vpow.pop %v1013
      %v1015 = vmul.f32 %v969, 1.442695
      %v1016 = vpow.pop %v1015
      %v1017 = vmul.f32 %v970, 1.442695
      %v1018 = vpow.pop %v1017
      %v1019 = vmul.f32 %v971, 1.442695
      %v1020 = vpow.pop %v1019
      %v1021 = vmul.f32 %v972, 1.442695
      %v1022 = vpow.pop %v1021
      %v1023 = vmul.f32 %v973, 1.442695
      %v1024 = vpow.pop %v1023
      %v1025 = vmul.f32 %v974, 1.442695
      %v1026 = vpow.pop %v1025
      %v1027 = vmul.f32 %v975, 1.442695
      %v1028 = vpow.pop %v1027
      %v1029 = vmul.f32 %v976, 1.442695
      %v1030 = vpow.pop %v1029
      %v1031 = vmul.f32 %v977, 1.442695
      %v1032 = vpow.pop %v1031
      %v1033 = vmul.f32 %v978, 1.442695
      %v1034 = vpow.pop %v1033
      %v1035 = vmul.f32 %v979, 1.442695
      %v1036 = vpow.pop %v1035
      %v1037 = vmul.f32 %v980, 1.442695
      %v1038 = vpow.pop %v1037
      %v1039 = vmul.f32 %v981, 1.442695
      %v1040 = vpow.pop %v1039
      %v1041 = vmul.f32 %v982, 1.442695
      %v1042 = vpow.pop %v1041
      %v1043 = vmul.f32 %v983, 1.442695
      %v1044 = vpow.pop %v1043
      %v1045 = vmul.f32 %v984, 1.442695
      %v1046 = vpow.pop %v1045
      %v1047 = vmul.f32 %v985, 1.442695
      %v1048 = vpow.pop %v1047
      %v1049 = vmul.f32 %v986, 1.442695
      %v1050 = vpow.pop %v1049
      %v1051 = vpack.c.bf16 %v990, %v988
      %v1052 = vpack.c.bf16 %v994, %v992
      %v1053 = vpack.c.bf16 %v998, %v996
      %v1054 = vpack.c.bf16 %v1002, %v1000
      %v1055 = vpack.c.bf16 %v1006, %v1004
      %v1056 = vpack.c.bf16 %v1010, %v1008
      %v1057 = vpack.c.bf16 %v1014, %v1012
      %v1058 = vpack.c.bf16 %v1018, %v1016
      %v1059 = vpack.c.bf16 %v1022, %v1020
      %v1060 = vpack.c.bf16 %v1026, %v1024
      %v1061 = vpack.c.bf16 %v1030, %v1028
      %v1062 = vpack.c.bf16 %v1034, %v1032
      %v1063 = vpack.c.bf16 %v1038, %v1036
      %v1064 = vpack.c.bf16 %v1042, %v1040
      %v1065 = vpack.c.bf16 %v1046, %v1044
      %v1066 = vpack.c.bf16 %v1050, %v1048
      %v1067 = vld [vmem:[%s282] sm:$0xff]
      %v1068 = vld [vmem:[%s282 + $0x8] sm:$0xff]
      %v1069 = vld [vmem:[%s282 + $0x10] sm:$0xff]
      %v1070 = vld [vmem:[%s282 + $0x18] sm:$0xff]
      %v1071 = vld [vmem:[%s282 + $0x20] sm:$0xff]
      %v1072 = vld [vmem:[%s282 + $0x28] sm:$0xff]
      %v1073 = vld [vmem:[%s282 + $0x30] sm:$0xff]
      %v1074 = vld [vmem:[%s282 + $0x38] sm:$0xff]
      %v1075 = vunpack.c.0.s8 %v1067
      %v1076 = vunpack.c.0.s8 %v1068
      %v1077 = vunpack.c.1.s8 %v1067
      %v1078 = vunpack.c.1.s8 %v1068
      %v1079 = vunpack.c.2.s8 %v1067
      %v1080 = vunpack.c.2.s8 %v1068
      %v1081 = vunpack.c.3.s8 %v1067
      %v1082 = vunpack.c.3.s8 %v1068
      %v1083 = vunpack.c.0.s8 %v1069
      %v1084 = vunpack.c.0.s8 %v1070
      %v1085 = vunpack.c.1.s8 %v1069
      %v1086 = vunpack.c.1.s8 %v1070
      %v1087 = vunpack.c.2.s8 %v1069
      %v1088 = vunpack.c.2.s8 %v1070
      %v1089 = vunpack.c.3.s8 %v1069
      %v1090 = vunpack.c.3.s8 %v1070
      %v1091 = vunpack.c.0.s8 %v1071
      %v1092 = vunpack.c.0.s8 %v1072
      %v1093 = vunpack.c.1.s8 %v1071
      %v1094 = vunpack.c.1.s8 %v1072
      %v1095 = vunpack.c.2.s8 %v1071
      %v1096 = vunpack.c.2.s8 %v1072
      %v1097 = vunpack.c.3.s8 %v1071
      %v1098 = vunpack.c.3.s8 %v1072
      %v1099 = vunpack.c.0.s8 %v1073
      %v1100 = vunpack.c.0.s8 %v1074
      %v1101 = vunpack.c.1.s8 %v1073
      %v1102 = vunpack.c.1.s8 %v1074
      %v1103 = vunpack.c.2.s8 %v1073
      %v1104 = vunpack.c.2.s8 %v1074
      %v1105 = vunpack.c.3.s8 %v1073
      %v1106 = vunpack.c.3.s8 %v1074
      %v1107 = vcvt.s32.f32 %v1075
      %v1108 = vcvt.s32.f32 %v1076
      %v1109 = vcvt.s32.f32 %v1077
      %v1110 = vcvt.s32.f32 %v1078
      %v1111 = vcvt.s32.f32 %v1079
      %v1112 = vcvt.s32.f32 %v1080
      %v1113 = vcvt.s32.f32 %v1081
      %v1114 = vcvt.s32.f32 %v1082
      %v1115 = vcvt.s32.f32 %v1083
      %v1116 = vcvt.s32.f32 %v1084
      %v1117 = vcvt.s32.f32 %v1085
      %v1118 = vcvt.s32.f32 %v1086
      %v1119 = vcvt.s32.f32 %v1087
      %v1120 = vcvt.s32.f32 %v1088
      %v1121 = vcvt.s32.f32 %v1089
      %v1122 = vcvt.s32.f32 %v1090
      %v1123 = vcvt.s32.f32 %v1091
      %v1124 = vcvt.s32.f32 %v1092
      %v1125 = vcvt.s32.f32 %v1093
      %v1126 = vcvt.s32.f32 %v1094
      %v1127 = vcvt.s32.f32 %v1095
      %v1128 = vcvt.s32.f32 %v1096
      %v1129 = vcvt.s32.f32 %v1097
      %v1130 = vcvt.s32.f32 %v1098
      %v1131 = vcvt.s32.f32 %v1099
      %v1132 = vcvt.s32.f32 %v1100
      %v1133 = vcvt.s32.f32 %v1101
      %v1134 = vcvt.s32.f32 %v1102
      %v1135 = vcvt.s32.f32 %v1103
      %v1136 = vcvt.s32.f32 %v1104
      %v1137 = vcvt.s32.f32 %v1105
      %v1138 = vcvt.s32.f32 %v1106
      %v1139 = vpack.c.bf16 %v1108, %v1107
      %v1140 = vpack.c.bf16 %v1110, %v1109
      %v1141 = vpack.c.bf16 %v1112, %v1111
      %v1142 = vpack.c.bf16 %v1114, %v1113
      %v1143 = vpack.c.bf16 %v1116, %v1115
      %v1144 = vpack.c.bf16 %v1118, %v1117
      %v1145 = vpack.c.bf16 %v1120, %v1119
      %v1146 = vpack.c.bf16 %v1122, %v1121
      %v1147 = vpack.c.bf16 %v1124, %v1123
      %v1148 = vpack.c.bf16 %v1126, %v1125
      %v1149 = vpack.c.bf16 %v1128, %v1127
      %v1150 = vpack.c.bf16 %v1130, %v1129
      %v1151 = vpack.c.bf16 %v1132, %v1131
      %v1152 = vpack.c.bf16 %v1134, %v1133
      %v1153 = vpack.c.bf16 %v1136, %v1135
      %v1154 = vpack.c.bf16 %v1138, %v1137
      %v1155 = vunpack.c.l.bf16 %v1051
      %v1156 = vunpack.c.h.bf16 %v1051
      %v1157 = vunpack.c.l.bf16 %v1052
      %v1158 = vunpack.c.h.bf16 %v1052
      %v1159 = vunpack.c.l.bf16 %v1053
      %v1160 = vunpack.c.h.bf16 %v1053
      %v1161 = vunpack.c.l.bf16 %v1054
      %v1162 = vunpack.c.h.bf16 %v1054
      %v1163 = vunpack.c.l.bf16 %v1055
      %v1164 = vunpack.c.h.bf16 %v1055
      %v1165 = vunpack.c.l.bf16 %v1056
      %v1166 = vunpack.c.h.bf16 %v1056
      %v1167 = vunpack.c.l.bf16 %v1057
      %v1168 = vunpack.c.h.bf16 %v1057
      %v1169 = vunpack.c.l.bf16 %v1058
      %v1170 = vunpack.c.h.bf16 %v1058
      %v1171 = vunpack.c.l.bf16 %v1059
      %v1172 = vunpack.c.h.bf16 %v1059
      %v1173 = vunpack.c.l.bf16 %v1060
      %v1174 = vunpack.c.h.bf16 %v1060
      %v1175 = vunpack.c.l.bf16 %v1061
      %v1176 = vunpack.c.h.bf16 %v1061
      %v1177 = vunpack.c.l.bf16 %v1062
      %v1178 = vunpack.c.h.bf16 %v1062
      %v1179 = vunpack.c.l.bf16 %v1063
      %v1180 = vunpack.c.h.bf16 %v1063
      %v1181 = vunpack.c.l.bf16 %v1064
      %v1182 = vunpack.c.h.bf16 %v1064
      %v1183 = vunpack.c.l.bf16 %v1065
      %v1184 = vunpack.c.h.bf16 %v1065
      %v1185 = vunpack.c.l.bf16 %v1066
      %v1186 = vunpack.c.h.bf16 %v1066
      %v1187 = vunpack.c.l.bf16 %v1139
      %v1188 = vunpack.c.h.bf16 %v1139
      %v1189 = vunpack.c.l.bf16 %v1140
      %v1190 = vunpack.c.h.bf16 %v1140
      %v1191 = vunpack.c.l.bf16 %v1141
      %v1192 = vunpack.c.h.bf16 %v1141
      %v1193 = vunpack.c.l.bf16 %v1142
      %v1194 = vunpack.c.h.bf16 %v1142
      %v1195 = vunpack.c.l.bf16 %v1143
      %v1196 = vunpack.c.h.bf16 %v1143
      %v1197 = vunpack.c.l.bf16 %v1144
      %v1198 = vunpack.c.h.bf16 %v1144
      %v1199 = vunpack.c.l.bf16 %v1145
      %v1200 = vunpack.c.h.bf16 %v1145
      %v1201 = vunpack.c.l.bf16 %v1146
      %v1202 = vunpack.c.h.bf16 %v1146
      %v1203 = vunpack.c.l.bf16 %v1147
      %v1204 = vunpack.c.h.bf16 %v1147
      %v1205 = vunpack.c.l.bf16 %v1148
      %v1206 = vunpack.c.h.bf16 %v1148
      %v1207 = vunpack.c.l.bf16 %v1149
      %v1208 = vunpack.c.h.bf16 %v1149
      %v1209 = vunpack.c.l.bf16 %v1150
      %v1210 = vunpack.c.h.bf16 %v1150
      %v1211 = vunpack.c.l.bf16 %v1151
      %v1212 = vunpack.c.h.bf16 %v1151
      %v1213 = vunpack.c.l.bf16 %v1152
      %v1214 = vunpack.c.h.bf16 %v1152
      %v1215 = vunpack.c.l.bf16 %v1153
      %v1216 = vunpack.c.h.bf16 %v1153
      %v1217 = vunpack.c.l.bf16 %v1154
      %v1218 = vunpack.c.h.bf16 %v1154
      %v1219 = vmul.f32 %v1155, %v1187
      %v1220 = vmul.f32 %v1156, %v1188
      %v1221 = vmul.f32 %v1157, %v1189
      %v1222 = vmul.f32 %v1158, %v1190
      %v1223 = vmul.f32 %v1159, %v1191
      %v1224 = vmul.f32 %v1160, %v1192
      %v1225 = vmul.f32 %v1161, %v1193
      %v1226 = vmul.f32 %v1162, %v1194
      %v1227 = vmul.f32 %v1163, %v1195
      %v1228 = vmul.f32 %v1164, %v1196
      %v1229 = vmul.f32 %v1165, %v1197
      %v1230 = vmul.f32 %v1166, %v1198
      %v1231 = vmul.f32 %v1167, %v1199
      %v1232 = vmul.f32 %v1168, %v1200
      %v1233 = vmul.f32 %v1169, %v1201
      %v1234 = vmul.f32 %v1170, %v1202
      %v1235 = vmul.f32 %v1171, %v1203
      %v1236 = vmul.f32 %v1172, %v1204
      %v1237 = vmul.f32 %v1173, %v1205
      %v1238 = vmul.f32 %v1174, %v1206
      %v1239 = vmul.f32 %v1175, %v1207
      %v1240 = vmul.f32 %v1176, %v1208
      %v1241 = vmul.f32 %v1177, %v1209
      %v1242 = vmul.f32 %v1178, %v1210
      %v1243 = vmul.f32 %v1179, %v1211
      %v1244 = vmul.f32 %v1180, %v1212
      %v1245 = vmul.f32 %v1181, %v1213
      %v1246 = vmul.f32 %v1182, %v1214
      %v1247 = vmul.f32 %v1183, %v1215
      %v1248 = vmul.f32 %v1184, %v1216
      %v1249 = vmul.f32 %v1185, %v1217
      %v1250 = vmul.f32 %v1186, %v1218
      %v1251 = vpack.c.bf16 %v1221, %v1219
      %v1252 = vpack.c.bf16 %v1222, %v1220
      %v1253 = vpack.c.bf16 %v1225, %v1223
      %v1254 = vpack.c.bf16 %v1226, %v1224
      %v1255 = vpack.c.bf16 %v1229, %v1227
      %v1256 = vpack.c.bf16 %v1230, %v1228
      %v1257 = vpack.c.bf16 %v1233, %v1231
      %v1258 = vpack.c.bf16 %v1234, %v1232
      %v1259 = vpack.c.bf16 %v1237, %v1235
      %v1260 = vpack.c.bf16 %v1238, %v1236
      %v1261 = vpack.c.bf16 %v1241, %v1239
      %v1262 = vpack.c.bf16 %v1242, %v1240
      %v1263 = vpack.c.bf16 %v1245, %v1243
      %v1264 = vpack.c.bf16 %v1246, %v1244
      %v1265 = vpack.c.bf16 %v1249, %v1247
      %v1266 = vpack.c.bf16 %v1250, %v1248
      %v1267 = vld [vmem:[%s1] sm:$0xf]
      %v1268 = vld [vmem:[%s1 + $0x4] sm:$0xf]
      %v1269 = vld [vmem:[%s1 + $0x8] sm:$0xf]
      %v1270 = vld [vmem:[%s1 + $0xc] sm:$0xf]
      %v1271 = vld [vmem:[%s1 + $0x10] sm:$0xf]
      %v1272 = vld [vmem:[%s1 + $0x14] sm:$0xf]
      %v1273 = vld [vmem:[%s1 + $0x18] sm:$0xf]
      %v1274 = vld [vmem:[%s1 + $0x1c] sm:$0xf]
      %v1275 = vld [vmem:[%s1 + $0x20] sm:$0xf]
      %v1276 = vld [vmem:[%s1 + $0x24] sm:$0xf]
      %v1277 = vld [vmem:[%s1 + $0x28] sm:$0xf]
      %v1278 = vld [vmem:[%s1 + $0x2c] sm:$0xf]
      %v1279 = vld [vmem:[%s1 + $0x30] sm:$0xf]
      %v1280 = vld [vmem:[%s1 + $0x34] sm:$0xf]
      %v1281 = vld [vmem:[%s1 + $0x38] sm:$0xf]
      %v1282 = vld [vmem:[%s1 + $0x3c] sm:$0xf]
      %v1283 = vld [vmem:[%s1 + $0x40] sm:$0xf]
      %v1284 = vld [vmem:[%s1 + $0x44] sm:$0xf]
      %v1285 = vld [vmem:[%s1 + $0x48] sm:$0xf]
      %v1286 = vld [vmem:[%s1 + $0x4c] sm:$0xf]
      %v1287 = vld [vmem:[%s1 + $0x50] sm:$0xf]
      %v1288 = vld [vmem:[%s1 + $0x54] sm:$0xf]
      %v1289 = vld [vmem:[%s1 + $0x58] sm:$0xf]
      %v1290 = vld [vmem:[%s1 + $0x5c] sm:$0xf]
      %v1291 = vld [vmem:[%s1 + $0x60] sm:$0xf]
      %v1292 = vld [vmem:[%s1 + $0x64] sm:$0xf]
      %v1293 = vld [vmem:[%s1 + $0x68] sm:$0xf]
      %v1294 = vld [vmem:[%s1 + $0x6c] sm:$0xf]
      %v1295 = vld [vmem:[%s1 + $0x70] sm:$0xf]
      %v1296 = vld [vmem:[%s1 + $0x74] sm:$0xf]
      %v1297 = vld [vmem:[%s1 + $0x78] sm:$0xf]
      %v1298 = vld [vmem:[%s1 + $0x7c] sm:$0xf]
      %v1331 = vunpack.c.l.b16 %v1267
      %v1332 = vunpack.c.l.b16 %v1268
      %v1333 = vunpack.c.l.b16 %v1269
      %v1334 = vunpack.c.l.b16 %v1270
      %v1335 = vunpack.c.l.b16 %v1271
      %v1336 = vunpack.c.l.b16 %v1272
      %v1337 = vunpack.c.l.b16 %v1273
      %v1338 = vunpack.c.l.b16 %v1274
      %v1339 = vunpack.c.l.b16 %v1275
      %v1340 = vunpack.c.l.b16 %v1276
      %v1341 = vunpack.c.l.b16 %v1277
      %v1342 = vunpack.c.l.b16 %v1278
      %v1343 = vunpack.c.l.b16 %v1279
      %v1344 = vunpack.c.l.b16 %v1280
      %v1345 = vunpack.c.l.b16 %v1281
      %v1346 = vunpack.c.l.b16 %v1282
      %v1347 = vunpack.c.l.b16 %v1283
      %v1348 = vunpack.c.l.b16 %v1284
      %v1349 = vunpack.c.l.b16 %v1285
      %v1350 = vunpack.c.l.b16 %v1286
      %v1351 = vunpack.c.l.b16 %v1287
      %v1352 = vunpack.c.l.b16 %v1288
      %v1353 = vunpack.c.l.b16 %v1289
      %v1354 = vunpack.c.l.b16 %v1290
      %v1355 = vunpack.c.l.b16 %v1291
      %v1356 = vunpack.c.l.b16 %v1292
      %v1357 = vunpack.c.l.b16 %v1293
      %v1358 = vunpack.c.l.b16 %v1294
      %v1359 = vunpack.c.l.b16 %v1295
      %v1360 = vunpack.c.l.b16 %v1296
      %v1361 = vunpack.c.l.b16 %v1297
      %v1362 = vunpack.c.l.b16 %v1298
      %v1363 = vpack.c.b16 %v1332, %v1331
      %v1364 = vpack.c.b16 %v1334, %v1333
      %v1365 = vpack.c.b16 %v1336, %v1335
      %v1366 = vpack.c.b16 %v1338, %v1337
      %v1367 = vpack.c.b16 %v1340, %v1339
      %v1368 = vpack.c.b16 %v1342, %v1341
      %v1369 = vpack.c.b16 %v1344, %v1343
      %v1370 = vpack.c.b16 %v1346, %v1345
      %v1371 = vpack.c.b16 %v1348, %v1347
      %v1372 = vpack.c.b16 %v1350, %v1349
      %v1373 = vpack.c.b16 %v1352, %v1351
      %v1374 = vpack.c.b16 %v1354, %v1353
      %v1375 = vpack.c.b16 %v1356, %v1355
      %v1376 = vpack.c.b16 %v1358, %v1357
      %v1377 = vpack.c.b16 %v1360, %v1359
      %v1378 = vpack.c.b16 %v1362, %v1361
      %1395 = vmatpush.bf16.msra.mxu0 %v1370
      %1396 = vmatpush.bf16.msra.mxu0 %v1369
      %1397 = vmatpush.bf16.msra.mxu0 %v1368
      %1398 = vmatpush.bf16.msra.mxu0 %v1367
      %1399 = vmatpush.bf16.msra.mxu0 %v1366
      %1400 = vmatpush.bf16.msra.mxu0 %v1365
      %1401 = vmatpush.bf16.msra.mxu0 %v1364
      %1402 = vmatpush.bf16.msra.mxu0 %v1363
      %1403 = vmatmul.bf16.gmra.mxu0 %v1251
      %v1404 = vpop.f32.mrf.mxu0
      %v1405 = vadd.f32 0.0, %v1404
      %v1406 = vpop.f32.mrf.mxu0
      %v1407 = vadd.f32 0.0, %v1406
      %1408 = vmatmul.bf16.gmra.mxu0 %v1253
      %v1409 = vpop.f32.mrf.mxu0
      %v1410 = vadd.f32 0.0, %v1409
      %v1411 = vpop.f32.mrf.mxu0
      %v1412 = vadd.f32 0.0, %v1411
      %1413 = vmatmul.bf16.gmra.mxu0 %v1255
      %v1414 = vpop.f32.mrf.mxu0
      %v1415 = vadd.f32 0.0, %v1414
      %v1416 = vpop.f32.mrf.mxu0
      %v1417 = vadd.f32 0.0, %v1416
      %1418 = vmatmul.bf16.gmra.mxu0 %v1257
      %v1419 = vpop.f32.mrf.mxu0
      %v1420 = vadd.f32 0.0, %v1419
      %v1421 = vpop.f32.mrf.mxu0
      %v1422 = vadd.f32 0.0, %v1421
      %1423 = vmatmul.bf16.gmra.mxu0 %v1259
      %v1424 = vpop.f32.mrf.mxu0
      %v1425 = vadd.f32 0.0, %v1424
      %v1426 = vpop.f32.mrf.mxu0
      %v1427 = vadd.f32 0.0, %v1426
      %1428 = vmatmul.bf16.gmra.mxu0 %v1261
      %v1429 = vpop.f32.mrf.mxu0
      %v1430 = vadd.f32 0.0, %v1429
      %v1431 = vpop.f32.mrf.mxu0
      %v1432 = vadd.f32 0.0, %v1431
      %1433 = vmatmul.bf16.gmra.mxu0 %v1263
      %v1434 = vpop.f32.mrf.mxu0
      %v1435 = vadd.f32 0.0, %v1434
      %v1436 = vpop.f32.mrf.mxu0
      %v1437 = vadd.f32 0.0, %v1436
      %1438 = vmatmul.bf16.gmra.mxu0 %v1265
      %v1439 = vpop.f32.mrf.mxu0
      %v1440 = vadd.f32 0.0, %v1439
      %v1441 = vpop.f32.mrf.mxu0
      %v1442 = vadd.f32 0.0, %v1441
      %1443 = vdwg.mxu0
      %1444 = vmatpush.bf16.msra.mxu0 %v1378
      %1445 = vmatpush.bf16.msra.mxu0 %v1377
      %1446 = vmatpush.bf16.msra.mxu0 %v1376
      %1447 = vmatpush.bf16.msra.mxu0 %v1375
      %1448 = vmatpush.bf16.msra.mxu0 %v1374
      %1449 = vmatpush.bf16.msra.mxu0 %v1373
      %1450 = vmatpush.bf16.msra.mxu0 %v1372
      %1451 = vmatpush.bf16.msra.mxu0 %v1371
      %1452 = vmatmul.bf16.gmra.mxu0 %v1252
      %v1453 = vpop.f32.mrf.mxu0
      %v1454 = vadd.f32 %v1405, %v1453
      %v1455 = vpop.f32.mrf.mxu0
      %v1456 = vadd.f32 %v1407, %v1455
      %1457 = vmatmul.bf16.gmra.mxu0 %v1254
      %v1458 = vpop.f32.mrf.mxu0
      %v1459 = vadd.f32 %v1410, %v1458
      %v1460 = vpop.f32.mrf.mxu0
      %v1461 = vadd.f32 %v1412, %v1460
      %1462 = vmatmul.bf16.gmra.mxu0 %v1256
      %v1463 = vpop.f32.mrf.mxu0
      %v1464 = vadd.f32 %v1415, %v1463
      %v1465 = vpop.f32.mrf.mxu0
      %v1466 = vadd.f32 %v1417, %v1465
      %1467 = vmatmul.bf16.gmra.mxu0 %v1258
      %v1468 = vpop.f32.mrf.mxu0
      %v1469 = vadd.f32 %v1420, %v1468
      %v1470 = vpop.f32.mrf.mxu0
      %v1471 = vadd.f32 %v1422, %v1470
      %1472 = vmatmul.bf16.gmra.mxu0 %v1260
      %v1473 = vpop.f32.mrf.mxu0
      %v1474 = vadd.f32 %v1425, %v1473
      %v1475 = vpop.f32.mrf.mxu0
      %v1476 = vadd.f32 %v1427, %v1475
      %1477 = vmatmul.bf16.gmra.mxu0 %v1262
      %v1478 = vpop.f32.mrf.mxu0
      %v1479 = vadd.f32 %v1430, %v1478
      %v1480 = vpop.f32.mrf.mxu0
      %v1481 = vadd.f32 %v1432, %v1480
      %1482 = vmatmul.bf16.gmra.mxu0 %v1264
      %v1483 = vpop.f32.mrf.mxu0
      %v1484 = vadd.f32 %v1435, %v1483
      %v1485 = vpop.f32.mrf.mxu0
      %v1486 = vadd.f32 %v1437, %v1485
      %1487 = vmatmul.bf16.gmra.mxu0 %v1266
      %v1488 = vpop.f32.mrf.mxu0
      %v1489 = vadd.f32 %v1440, %v1488
      %v1490 = vpop.f32.mrf.mxu0
      %v1491 = vadd.f32 %v1442, %v1490
      %1492 = vdwg.mxu0
      %v1493 = vrcp.pop %v1454
      %v1494 = vrcp.pop %v1456
      %v1495 = vrcp.pop %v1459
      %v1496 = vrcp.pop %v1461
      %v1497 = vrcp.pop %v1464
      %v1498 = vrcp.pop %v1466
      %v1499 = vrcp.pop %v1469
      %v1500 = vrcp.pop %v1471
      %v1501 = vrcp.pop %v1474
      %v1502 = vrcp.pop %v1476
      %v1503 = vrcp.pop %v1479
      %v1504 = vrcp.pop %v1481
      %v1505 = vrcp.pop %v1484
      %v1506 = vrcp.pop %v1486
      %v1507 = vrcp.pop %v1489
      %v1508 = vrcp.pop %v1491
      %1510 = vset.pattern.permute.xlu0 32
      %1511 = vperm.xlu0 %1510, %v1493
      %v1512 = vpop.permute.xlu0 %1511
      %1515 = vset.pattern.permute.xlu0 32
      %1516 = vperm.xlu0 %1515, %v1494
      %v1517 = vpop.permute.xlu0 %1516
      %1520 = vset.pattern.permute.xlu0 32
      %1521 = vperm.xlu0 %1520, %v1495
      %v1522 = vpop.permute.xlu0 %1521
      %1525 = vset.pattern.permute.xlu0 32
      %1526 = vperm.xlu0 %1525, %v1496
      %v1527 = vpop.permute.xlu0 %1526
      %1530 = vset.pattern.permute.xlu0 32
      %1531 = vperm.xlu0 %1530, %v1497
      %v1532 = vpop.permute.xlu0 %1531
      %1535 = vset.pattern.permute.xlu0 32
      %1536 = vperm.xlu0 %1535, %v1498
      %v1537 = vpop.permute.xlu0 %1536
      %1540 = vset.pattern.permute.xlu0 32
      %1541 = vperm.xlu0 %1540, %v1499
      %v1542 = vpop.permute.xlu0 %1541
      %1545 = vset.pattern.permute.xlu0 32
      %1546 = vperm.xlu0 %1545, %v1500
      %v1547 = vpop.permute.xlu0 %1546
      %1550 = vset.pattern.permute.xlu0 32
      %1551 = vperm.xlu0 %1550, %v1501
      %v1552 = vpop.permute.xlu0 %1551
      %1555 = vset.pattern.permute.xlu0 32
      %1556 = vperm.xlu0 %1555, %v1502
      %v1557 = vpop.permute.xlu0 %1556
      %1560 = vset.pattern.permute.xlu0 32
      %1561 = vperm.xlu0 %1560, %v1503
      %v1562 = vpop.permute.xlu0 %1561
      %1565 = vset.pattern.permute.xlu0 32
      %1566 = vperm.xlu0 %1565, %v1504
      %v1567 = vpop.permute.xlu0 %1566
      %1570 = vset.pattern.permute.xlu0 32
      %1571 = vperm.xlu0 %1570, %v1505
      %v1572 = vpop.permute.xlu0 %1571
      %1575 = vset.pattern.permute.xlu0 32
      %1576 = vperm.xlu0 %1575, %v1506
      %v1577 = vpop.permute.xlu0 %1576
      %1580 = vset.pattern.permute.xlu0 32
      %1581 = vperm.xlu0 %1580, %v1507
      %v1582 = vpop.permute.xlu0 %1581
      %1585 = vset.pattern.permute.xlu0 32
      %1586 = vperm.xlu0 %1585, %v1508
      %v1587 = vpop.permute.xlu0 %1586
      %v1589 = vmul.f32 %v1454, %v1512
      %v1590 = vmul.f32 %v1456, %v1517
      %v1591 = vmul.f32 %v1459, %v1522
      %v1592 = vmul.f32 %v1461, %v1527
      %v1593 = vmul.f32 %v1464, %v1532
      %v1594 = vmul.f32 %v1466, %v1537
      %v1595 = vmul.f32 %v1469, %v1542
      %v1596 = vmul.f32 %v1471, %v1547
      %v1597 = vmul.f32 %v1474, %v1552
      %v1598 = vmul.f32 %v1476, %v1557
      %v1599 = vmul.f32 %v1479, %v1562
      %v1600 = vmul.f32 %v1481, %v1567
      %v1601 = vmul.f32 %v1484, %v1572
      %v1602 = vmul.f32 %v1486, %v1577
      %v1603 = vmul.f32 %v1489, %v1582
      %v1604 = vmul.f32 %v1491, %v1587
      %v1605 = vld [vmem:[%s5] sm:$0x1]
      %v1607 = vperm.slane %v1605, 0
      %v1609 = vadd.f32 %v1589, %v1607
      %v1610 = vadd.f32 %v1590, %v1607
      %v1611 = vadd.f32 %v1591, %v1607
      %v1612 = vadd.f32 %v1592, %v1607
      %v1613 = vadd.f32 %v1593, %v1607
      %v1614 = vadd.f32 %v1594, %v1607
      %v1615 = vadd.f32 %v1595, %v1607
      %v1616 = vadd.f32 %v1596, %v1607
      %v1617 = vadd.f32 %v1597, %v1607
      %v1618 = vadd.f32 %v1598, %v1607
      %v1619 = vadd.f32 %v1599, %v1607
      %v1620 = vadd.f32 %v1600, %v1607
      %v1621 = vadd.f32 %v1601, %v1607
      %v1622 = vadd.f32 %v1602, %v1607
      %v1623 = vadd.f32 %v1603, %v1607
      %v1624 = vadd.f32 %v1604, %v1607
      %v1625 = vmax.f32 %v1609, 0.0
      %v1626 = vmax.f32 %v1610, 0.0
      %v1627 = vmax.f32 %v1611, 0.0
      %v1628 = vmax.f32 %v1612, 0.0
      %v1629 = vmax.f32 %v1613, 0.0
      %v1630 = vmax.f32 %v1614, 0.0
      %v1631 = vmax.f32 %v1615, 0.0
      %v1632 = vmax.f32 %v1616, 0.0
      %v1633 = vmax.f32 %v1617, 0.0
      %v1634 = vmax.f32 %v1618, 0.0
      %v1635 = vmax.f32 %v1619, 0.0
      %v1636 = vmax.f32 %v1620, 0.0
      %v1637 = vmax.f32 %v1621, 0.0
      %v1638 = vmax.f32 %v1622, 0.0
      %v1639 = vmax.f32 %v1623, 0.0
      %v1640 = vmax.f32 %v1624, 0.0
      %vm1641 = vcmask 261120
      %1642 = vst.msk [vmem:[%s300] sm:$0xff] %vm1641, %v1625
      %1643 = vst.msk [vmem:[%s300 + $0x8] sm:$0xff] %vm1641, %v1626
      %1644 = vst.msk [vmem:[%s300 + $0x10] sm:$0xff] %vm1641, %v1627
      %1645 = vst.msk [vmem:[%s300 + $0x18] sm:$0xff] %vm1641, %v1628
      %1646 = vst.msk [vmem:[%s300 + $0x20] sm:$0xff] %vm1641, %v1629
      %1647 = vst.msk [vmem:[%s300 + $0x28] sm:$0xff] %vm1641, %v1630
      %1648 = vst.msk [vmem:[%s300 + $0x30] sm:$0xff] %vm1641, %v1631
      %1649 = vst.msk [vmem:[%s300 + $0x38] sm:$0xff] %vm1641, %v1632
      %1650 = vst.msk [vmem:[%s300 + $0x40] sm:$0xff] %vm1641, %v1633
      %1651 = vst.msk [vmem:[%s300 + $0x48] sm:$0xff] %vm1641, %v1634
      %1652 = vst.msk [vmem:[%s300 + $0x50] sm:$0xff] %vm1641, %v1635
      %1653 = vst.msk [vmem:[%s300 + $0x58] sm:$0xff] %vm1641, %v1636
      %1654 = vst.msk [vmem:[%s300 + $0x60] sm:$0xff] %vm1641, %v1637
      %1655 = vst.msk [vmem:[%s300 + $0x68] sm:$0xff] %vm1641, %v1638
      %1656 = vst.msk [vmem:[%s300 + $0x70] sm:$0xff] %vm1641, %v1639
      %1657 = vst.msk [vmem:[%s300 + $0x78] sm:$0xff] %vm1641, %v1640
      %s1658 = smul.u32 16, %s17
      %p1659 = scmp.lt.s32.totalorder %s1658, 31
      %s1660 = scalar_select %p1659, %s1658, 31
      %s1661 = smul.addr %s1660, 8
      %s1662 = scalar_lea.vmem %s6, %s1661
      // Predicated region
      $region45: #{gat_layer.1} parent=43 // pred_check
        %p1663 = pneg %p176
      $region46: #{gat_layer.1} parent=43 // pred_check_branch
        %1665 = sbr.rel (%p1663) target = $region48
      $region47: #{gat_layer.1} parent=43 // pred_region
        %s1666 = smul.u32 16, %s17
      $region48: #{gat_layer.1} parent=43 // pred_fallthru
        _
    $region44: #{gat_layer.1} parent=5 // pred_fallthru
      _
    %p1667 = scmp.le.s32.totalorder 2, %s12
    // Predicated region
    $region49: #{gat_layer.1} parent=5 // pred_check
      %p1668 = pneg %p1667
    $region50: #{gat_layer.1} parent=5 // pred_check_branch
      %1670 = sbr.rel (%p1668) target = $region52
    $region51: #{gat_layer.1} parent=5 // pred_region
      %s1671 = ssub.s32 %s12, 2
      // Predicated region
      $region53: #{gat_layer.1} parent=51 // pred_check
        %p1672 = pneg %p182
      $region54: #{gat_layer.1} parent=51 // pred_check_branch
        %1674 = sbr.rel (%p1672) target = $region56
      $region55: #{gat_layer.1} parent=51 // pred_region
        %s1675 = smul.u32 16, %s18
        %p1676 = scmp.lt.s32.totalorder %s1675, 31
        %s1677 = scalar_select %p1676, %s1675, 31
        %s1678 = smul.addr %s1677, 8
        %s1679 = scalar_lea.vmem %s6, %s1678
      $region56: #{gat_layer.1} parent=51 // pred_fallthru
        _
    $region52: #{gat_layer.1} parent=5 // pred_fallthru
      _
  $region6: #{gat_layer.1} parent=0 // loop_footer
    %s16 = sadd.s32 1, %s12
  $region7: #{gat_layer.1} parent=0 // loop_footer_branch
    %11 = sbr.rel target = $region3
  $region8: #{gat_layer.1} parent=0 // loop_exit
    _

</llo_original>
